<compile_context>
chip_gen: v6e
topology: v6e:2x2x1
jax: 0.10.0
libtpu: 0.0.40
codegen_flags: <defaults>
</compile_context>

<pallas_src>
import jax
import jax.numpy as jnp
from jax.experimental import pallas as pl
from jax.experimental.pallas import tpu as pltpu


def mlp_kernel(x_ref,
               w1, b1, w2, b2, w3, b3, w4, b4, w5, b5, w6, b6,
               o_ref):
    """All six Linear layers fused; one (TM, dim_in_padded) batch tile per grid step.

    Activations travel in x_ref.dtype (bf16 on v6e/v7x, f32 on v5e); each matmul
    accumulates in f32 on the MXU, bias-add + ReLU run in f32, then a single
    down-cast per hidden layer.
    """
    act_dtype = x_ref.dtype

    def hidden(h, w_ref, b_ref):
        acc = jnp.dot(h.astype(w_ref.dtype), w_ref[...],
                      preferred_element_type=jnp.float32) + b_ref[...]
        return jnp.maximum(acc, 0.0).astype(act_dtype)

    h = x_ref[...]
    h = hidden(h, w1, b1)
    h = hidden(h, w2, b2)
    h = hidden(h, w3, b3)
    h = hidden(h, w4, b4)
    h = hidden(h, w5, b5)
    out = jnp.dot(h.astype(w6.dtype), w6[...],
                  preferred_element_type=jnp.float32) + b6[...]
    o_ref[...] = out.astype(o_ref.dtype)


def _pad_up(n, m):
    return ((n + m - 1) // m) * m


def init_params(key, dims):
    """PyTorch-style nn.Linear init (uniform +-1/sqrt(fan_in)), deterministic.

    Weights stored as (in, out) (transposed vs torch) so the hot path is `h @ W + b`.
    """
    params = []
    for i in range(len(dims) - 1):
        fan_in, fan_out = dims[i], dims[i + 1]
        key, kw, kb = jax.random.split(key, 3)
        bound = 1.0 / jnp.sqrt(jnp.float32(fan_in))
        w = jax.random.uniform(kw, (fan_in, fan_out), jnp.float32, -bound, bound)
        b = jax.random.uniform(kb, (fan_out,), jnp.float32, -bound, bound)
        params.extend([w, b])
    return params


def prepare_params(params, *, weight_dtype=jnp.bfloat16):
    """One-time prep (NOT on the per-forward hot path): zero-pad every layer to
    lane-dense widths (multiples of 128) and cast weights to the MXU dtype.

    Zero-padded weight rows/cols and zero biases keep the padded lanes exactly
    zero through ReLU, so the math is unchanged; padded rows/cols are sliced off
    in the forward wrapper.
    """
    ws, bs = params[0::2], params[1::2]
    dims = [ws[0].shape[0]] + [w.shape[-1] for w in ws]
    dims_p = [_pad_up(d, 128) for d in dims]

    flat = []
    for i, (w, b) in enumerate(zip(ws, bs)):
        w_p = (jnp.zeros((dims_p[i], dims_p[i + 1]), weight_dtype)
               .at[:w.shape[0], :w.shape[1]].set(w.astype(weight_dtype)))
        b_p = (jnp.zeros((1, dims_p[i + 1]), jnp.float32)
               .at[0, :b.shape[0]].set(b.astype(jnp.float32)))
        flat.extend([w_p, b_p])
    flat = jax.block_until_ready(flat)   # materialize once, reuse every forward

    return {"flat": tuple(flat), "dims": tuple(dims),
            "dims_p": tuple(dims_p), "dim_out": dims[-1]}


def _choose_tm(n):
    # Small batch: one tile with minimal (8-row) padding. Large batch: 512-row
    # tiles to amortize per-grid-step overhead; working set stays ~3-4 MiB,
    # comfortably under v7x's ~32 MiB scoped VMEM (weights single-buffered).
    if n <= 512:
        return _pad_up(max(n, 8), 8)
    return 512


def _default_act_dtype():
    """bf16 activations on chips with a bf16 VPU (v6e/v7x); f32 on v5e."""
    try:
        kind = jax.devices()[0].device_kind.lower()
    except Exception:
        return jnp.bfloat16
    if ("v5e" in kind) or ("v5 lite" in kind) or ("v5lite" in kind):
        return jnp.float32
    return jnp.bfloat16


def complex_mlp_forward(x, prepped, *, act_dtype=jnp.bfloat16, tm=None):
    """x: (N, C, H, W). Returns logits (N, dim_out) float32."""
    n = x.shape[0]
    dims, dims_p = prepped["dims"], prepped["dims_p"]
    dim_in, dim_out = dims[0], prepped["dim_out"]
    flat_args = prepped["flat"]

    x2d = x.reshape(n, -1)                 # torch's x.view(-1, C*H*W)
    assert x2d.shape[1] == dim_in, "input feature size mismatch"

    if tm is None:
        tm = _choose_tm(n)
    n_p = _pad_up(max(n, 1), tm)
    x_p = (jnp.zeros((n_p, dims_p[0]), act_dtype)
           .at[:n, :dim_in].set(x2d.astype(act_dtype)))

    grid = (n_p // tm,)
    in_specs = [pl.BlockSpec((tm, dims_p[0]), lambda i: (i, 0))]
    for a in flat_args:
        # Weights/biases: full-array blocks pinned across the batch grid; the
        # index_map is constant, so single-buffer them (no dead second buffer).
        in_specs.append(pl.BlockSpec(a.shape, lambda i: (0, 0),
                                     pipeline_mode=pl.Buffered(1)))
    out_spec = pl.BlockSpec((tm, dims_p[-1]), lambda i: (i, 0))

    # Megacore sharding only pays off with >=2 grid steps.
    semantics = ("parallel",) if grid[0] > 1 else ("arbitrary",)

    out = pl.pallas_call(
        mlp_kernel,
        out_shape=jax.ShapeDtypeStruct((n_p, dims_p[-1]), jnp.float32),
        grid=grid,
        in_specs=in_specs,
        out_specs=out_spec,
        compiler_params=pltpu.CompilerParams(dimension_semantics=semantics),
    )(x_p, *flat_args)

    return out[:n, :dim_out]


def reference_forward(x, params):
    n = x.shape[0]
    h = x.reshape(n, -1)
    ws, bs = params[0::2], params[1::2]
    for i in range(5):
        h = jnp.maximum(h @ ws[i] + bs[i], 0.0)
    return h @ ws[5] + bs[5]


if __name__ == "__main__":
    # Small, MLP-consistent shapes: x is (N=2, C=4, H=16, W=16) -> dim_in = 1024.
    dim_in, h1, h2, h3, h4, h5, dim_out = 1024, 256, 128, 128, 128, 64, 10

    key = jax.random.PRNGKey(0)
    key, kx = jax.random.split(key)
    x = jax.random.normal(kx, (2, 4, 16, 16), jnp.float32)

    params = init_params(key, (dim_in, h1, h2, h3, h4, h5, dim_out))

    # One-time weight prep (padding + bf16 cast) happens here, off the hot path.
    prepped = prepare_params(params)
    act_dtype = _default_act_dtype()

    out = complex_mlp_forward(x, prepped, act_dtype=act_dtype)
    out = jax.block_until_ready(out)

    ref = reference_forward(x, params)
    assert out.shape == (2, dim_out)
    # bf16 weights (+ bf16 activations on v6e/v7x) vs f32 reference -> loosened tolerance.
    assert jnp.allclose(out, ref, atol=5e-2, rtol=5e-2), "mismatch vs pure-JAX reference"

    print("KERNEL_OK")
</pallas_src>

<mosaic_0001>
module attributes {stable_mosaic.version = 11 : i64} {
  func.func @mlp_kernel(%arg0: i32, %arg1: memref<8x1024xbf16, #tpu.memory_space<vmem>>, %arg2: memref<1024x256xbf16, #tpu.memory_space<vmem>>, %arg3: memref<1x256xf32, #tpu.memory_space<vmem>>, %arg4: memref<256x128xbf16, #tpu.memory_space<vmem>>, %arg5: memref<1x128xf32, #tpu.memory_space<vmem>>, %arg6: memref<128x128xbf16, #tpu.memory_space<vmem>>, %arg7: memref<1x128xf32, #tpu.memory_space<vmem>>, %arg8: memref<128x128xbf16, #tpu.memory_space<vmem>>, %arg9: memref<1x128xf32, #tpu.memory_space<vmem>>, %arg10: memref<128x128xbf16, #tpu.memory_space<vmem>>, %arg11: memref<1x128xf32, #tpu.memory_space<vmem>>, %arg12: memref<128x128xbf16, #tpu.memory_space<vmem>>, %arg13: memref<1x128xf32, #tpu.memory_space<vmem>>, %arg14: memref<8x128xf32, #tpu.memory_space<vmem>>) attributes {dimension_semantics = [#tpu.dimension_semantics<arbitrary>], iteration_bounds = array<i64: 1>, scalar_prefetch = 0 : i64, scratch_operands = 0 : i64, tpu.core_type = #tpu.core_type<tc>, window_params = [{transform_indices = @transform_0, window_bounds = array<i64: 8, 1024>}, {pipeline_mode = #tpu.pipeline_mode<synchronous>, transform_indices = @transform_1, window_bounds = array<i64: 1024, 256>}, {pipeline_mode = #tpu.pipeline_mode<synchronous>, transform_indices = @transform_2, window_bounds = array<i64: 1, 256>}, {pipeline_mode = #tpu.pipeline_mode<synchronous>, transform_indices = @transform_3, window_bounds = array<i64: 256, 128>}, {pipeline_mode = #tpu.pipeline_mode<synchronous>, transform_indices = @transform_4, window_bounds = array<i64: 1, 128>}, {pipeline_mode = #tpu.pipeline_mode<synchronous>, transform_indices = @transform_5, window_bounds = array<i64: 128, 128>}, {pipeline_mode = #tpu.pipeline_mode<synchronous>, transform_indices = @transform_6, window_bounds = array<i64: 1, 128>}, {pipeline_mode = #tpu.pipeline_mode<synchronous>, transform_indices = @transform_7, window_bounds = array<i64: 128, 128>}, {pipeline_mode = #tpu.pipeline_mode<synchronous>, transform_indices = @transform_8, window_bounds = array<i64: 1, 128>}, {pipeline_mode = #tpu.pipeline_mode<synchronous>, transform_indices = @transform_9, window_bounds = array<i64: 128, 128>}, {pipeline_mode = #tpu.pipeline_mode<synchronous>, transform_indices = @transform_10, window_bounds = array<i64: 1, 128>}, {pipeline_mode = #tpu.pipeline_mode<synchronous>, transform_indices = @transform_11, window_bounds = array<i64: 128, 128>}, {pipeline_mode = #tpu.pipeline_mode<synchronous>, transform_indices = @transform_12, window_bounds = array<i64: 1, 128>}, {transform_indices = @transform_13, window_bounds = array<i64: 8, 128>}]} {
    %c0 = arith.constant 0 : index
    %c0_0 = arith.constant 0 : index
    %0 = vector.load %arg1[%c0, %c0_0] : memref<8x1024xbf16, #tpu.memory_space<vmem>>, vector<8x1024xbf16>
    %c0_1 = arith.constant 0 : index
    %c0_2 = arith.constant 0 : index
    %1 = vector.load %arg2[%c0_1, %c0_2] : memref<1024x256xbf16, #tpu.memory_space<vmem>>, vector<1024x256xbf16>
    %cst = arith.constant dense<0.000000e+00> : vector<8x256xf32>
    %2 = tpu.matmul %0, %1, %cst {dimension_numbers = #tpu.dot_dimension_numbers<[1], [0], [0], [1], [0, 0, 1, 1], [], []>} : vector<8x1024xbf16>, vector<1024x256xbf16>, vector<8x256xf32> -> vector<8x256xf32>
    %c0_3 = arith.constant 0 : index
    %c0_4 = arith.constant 0 : index
    %3 = vector.load %arg3[%c0_3, %c0_4] : memref<1x256xf32, #tpu.memory_space<vmem>>, vector<1x256xf32>
    %4 = vector.broadcast %3 : vector<1x256xf32> to vector<8x256xf32>
    %5 = arith.addf %2, %4 : vector<8x256xf32>
    %cst_5 = arith.constant 0.000000e+00 : f32
    %6 = vector.broadcast %cst_5 : f32 to vector<8x256xf32>
    %7 = arith.maximumf %5, %6 : vector<8x256xf32>
    %8 = arith.truncf %7 : vector<8x256xf32> to vector<8x256xbf16>
    %c0_6 = arith.constant 0 : index
    %c0_7 = arith.constant 0 : index
    %9 = vector.load %arg4[%c0_6, %c0_7] : memref<256x128xbf16, #tpu.memory_space<vmem>>, vector<256x128xbf16>
    %cst_8 = arith.constant dense<0.000000e+00> : vector<8x128xf32>
    %10 = tpu.matmul %8, %9, %cst_8 {dimension_numbers = #tpu.dot_dimension_numbers<[1], [0], [0], [1], [0, 0, 1, 1], [], []>} : vector<8x256xbf16>, vector<256x128xbf16>, vector<8x128xf32> -> vector<8x128xf32>
    %c0_9 = arith.constant 0 : index
    %c0_10 = arith.constant 0 : index
    %11 = vector.load %arg5[%c0_9, %c0_10] : memref<1x128xf32, #tpu.memory_space<vmem>>, vector<1x128xf32>
    %12 = vector.broadcast %11 : vector<1x128xf32> to vector<8x128xf32>
    %13 = arith.addf %10, %12 : vector<8x128xf32>
    %cst_11 = arith.constant 0.000000e+00 : f32
    %14 = vector.broadcast %cst_11 : f32 to vector<8x128xf32>
    %15 = arith.maximumf %13, %14 : vector<8x128xf32>
    %16 = arith.truncf %15 : vector<8x128xf32> to vector<8x128xbf16>
    %c0_12 = arith.constant 0 : index
    %c0_13 = arith.constant 0 : index
    %17 = vector.load %arg6[%c0_12, %c0_13] : memref<128x128xbf16, #tpu.memory_space<vmem>>, vector<128x128xbf16>
    %cst_14 = arith.constant dense<0.000000e+00> : vector<8x128xf32>
    %18 = tpu.matmul %16, %17, %cst_14 {dimension_numbers = #tpu.dot_dimension_numbers<[1], [0], [0], [1], [0, 0, 1, 1], [], []>} : vector<8x128xbf16>, vector<128x128xbf16>, vector<8x128xf32> -> vector<8x128xf32>
    %c0_15 = arith.constant 0 : index
    %c0_16 = arith.constant 0 : index
    %19 = vector.load %arg7[%c0_15, %c0_16] : memref<1x128xf32, #tpu.memory_space<vmem>>, vector<1x128xf32>
    %20 = vector.broadcast %19 : vector<1x128xf32> to vector<8x128xf32>
    %21 = arith.addf %18, %20 : vector<8x128xf32>
    %cst_17 = arith.constant 0.000000e+00 : f32
    %22 = vector.broadcast %cst_17 : f32 to vector<8x128xf32>
    %23 = arith.maximumf %21, %22 : vector<8x128xf32>
    %24 = arith.truncf %23 : vector<8x128xf32> to vector<8x128xbf16>
    %c0_18 = arith.constant 0 : index
    %c0_19 = arith.constant 0 : index
    %25 = vector.load %arg8[%c0_18, %c0_19] : memref<128x128xbf16, #tpu.memory_space<vmem>>, vector<128x128xbf16>
    %cst_20 = arith.constant dense<0.000000e+00> : vector<8x128xf32>
    %26 = tpu.matmul %24, %25, %cst_20 {dimension_numbers = #tpu.dot_dimension_numbers<[1], [0], [0], [1], [0, 0, 1, 1], [], []>} : vector<8x128xbf16>, vector<128x128xbf16>, vector<8x128xf32> -> vector<8x128xf32>
    %c0_21 = arith.constant 0 : index
    %c0_22 = arith.constant 0 : index
    %27 = vector.load %arg9[%c0_21, %c0_22] : memref<1x128xf32, #tpu.memory_space<vmem>>, vector<1x128xf32>
    %28 = vector.broadcast %27 : vector<1x128xf32> to vector<8x128xf32>
    %29 = arith.addf %26, %28 : vector<8x128xf32>
    %cst_23 = arith.constant 0.000000e+00 : f32
    %30 = vector.broadcast %cst_23 : f32 to vector<8x128xf32>
    %31 = arith.maximumf %29, %30 : vector<8x128xf32>
    %32 = arith.truncf %31 : vector<8x128xf32> to vector<8x128xbf16>
    %c0_24 = arith.constant 0 : index
    %c0_25 = arith.constant 0 : index
    %33 = vector.load %arg10[%c0_24, %c0_25] : memref<128x128xbf16, #tpu.memory_space<vmem>>, vector<128x128xbf16>
    %cst_26 = arith.constant dense<0.000000e+00> : vector<8x128xf32>
    %34 = tpu.matmul %32, %33, %cst_26 {dimension_numbers = #tpu.dot_dimension_numbers<[1], [0], [0], [1], [0, 0, 1, 1], [], []>} : vector<8x128xbf16>, vector<128x128xbf16>, vector<8x128xf32> -> vector<8x128xf32>
    %c0_27 = arith.constant 0 : index
    %c0_28 = arith.constant 0 : index
    %35 = vector.load %arg11[%c0_27, %c0_28] : memref<1x128xf32, #tpu.memory_space<vmem>>, vector<1x128xf32>
    %36 = vector.broadcast %35 : vector<1x128xf32> to vector<8x128xf32>
    %37 = arith.addf %34, %36 : vector<8x128xf32>
    %cst_29 = arith.constant 0.000000e+00 : f32
    %38 = vector.broadcast %cst_29 : f32 to vector<8x128xf32>
    %39 = arith.maximumf %37, %38 : vector<8x128xf32>
    %40 = arith.truncf %39 : vector<8x128xf32> to vector<8x128xbf16>
    %c0_30 = arith.constant 0 : index
    %c0_31 = arith.constant 0 : index
    %41 = vector.load %arg12[%c0_30, %c0_31] : memref<128x128xbf16, #tpu.memory_space<vmem>>, vector<128x128xbf16>
    %cst_32 = arith.constant dense<0.000000e+00> : vector<8x128xf32>
    %42 = tpu.matmul %40, %41, %cst_32 {dimension_numbers = #tpu.dot_dimension_numbers<[1], [0], [0], [1], [0, 0, 1, 1], [], []>} : vector<8x128xbf16>, vector<128x128xbf16>, vector<8x128xf32> -> vector<8x128xf32>
    %c0_33 = arith.constant 0 : index
    %c0_34 = arith.constant 0 : index
    %43 = vector.load %arg13[%c0_33, %c0_34] : memref<1x128xf32, #tpu.memory_space<vmem>>, vector<1x128xf32>
    %44 = vector.broadcast %43 : vector<1x128xf32> to vector<8x128xf32>
    %45 = arith.addf %42, %44 : vector<8x128xf32>
    %c0_35 = arith.constant 0 : index
    %c0_36 = arith.constant 0 : index
    %46 = vector.load %arg14[%c0_35, %c0_36] : memref<8x128xf32, #tpu.memory_space<vmem>>, vector<8x128xf32>
    tpu.vector_store %arg14[%c0_35, %c0_36], %45 {strides = array<i32>} : memref<8x128xf32, #tpu.memory_space<vmem>>, vector<8x128xf32>,
    return
  }
  func.func @transform_0(%arg0: i32) -> (i32, i32) {
    %c0_i32 = arith.constant 0 : i32
    %c0_i32_0 = arith.constant 0 : i32
    return %arg0, %c0_i32 : i32, i32
  }
  func.func @transform_1(%arg0: i32) -> (i32, i32) {
    %c0_i32 = arith.constant 0 : i32
    %c0_i32_0 = arith.constant 0 : i32
    %c0_i32_1 = arith.constant 0 : i32
    return %c0_i32, %c0_i32_0 : i32, i32
  }
  func.func @transform_2(%arg0: i32) -> (i32, i32) {
    %c0_i32 = arith.constant 0 : i32
    %c0_i32_0 = arith.constant 0 : i32
    %c0_i32_1 = arith.constant 0 : i32
    return %c0_i32, %c0_i32_0 : i32, i32
  }
  func.func @transform_3(%arg0: i32) -> (i32, i32) {
    %c0_i32 = arith.constant 0 : i32
    %c0_i32_0 = arith.constant 0 : i32
    %c0_i32_1 = arith.constant 0 : i32
    return %c0_i32, %c0_i32_0 : i32, i32
  }
  func.func @transform_4(%arg0: i32) -> (i32, i32) {
    %c0_i32 = arith.constant 0 : i32
    %c0_i32_0 = arith.constant 0 : i32
    %c0_i32_1 = arith.constant 0 : i32
    return %c0_i32, %c0_i32_0 : i32, i32
  }
  func.func @transform_5(%arg0: i32) -> (i32, i32) {
    %c0_i32 = arith.constant 0 : i32
    %c0_i32_0 = arith.constant 0 : i32
    %c0_i32_1 = arith.constant 0 : i32
    return %c0_i32, %c0_i32_0 : i32, i32
  }
  func.func @transform_6(%arg0: i32) -> (i32, i32) {
    %c0_i32 = arith.constant 0 : i32
    %c0_i32_0 = arith.constant 0 : i32
    %c0_i32_1 = arith.constant 0 : i32
    return %c0_i32, %c0_i32_0 : i32, i32
  }
  func.func @transform_7(%arg0: i32) -> (i32, i32) {
    %c0_i32 = arith.constant 0 : i32
    %c0_i32_0 = arith.constant 0 : i32
    %c0_i32_1 = arith.constant 0 : i32
    return %c0_i32, %c0_i32_0 : i32, i32
  }
  func.func @transform_8(%arg0: i32) -> (i32, i32) {
    %c0_i32 = arith.constant 0 : i32
    %c0_i32_0 = arith.constant 0 : i32
    %c0_i32_1 = arith.constant 0 : i32
    return %c0_i32, %c0_i32_0 : i32, i32
  }
  func.func @transform_9(%arg0: i32) -> (i32, i32) {
    %c0_i32 = arith.constant 0 : i32
    %c0_i32_0 = arith.constant 0 : i32
    %c0_i32_1 = arith.constant 0 : i32
    return %c0_i32, %c0_i32_0 : i32, i32
  }
  func.func @transform_10(%arg0: i32) -> (i32, i32) {
    %c0_i32 = arith.constant 0 : i32
    %c0_i32_0 = arith.constant 0 : i32
    %c0_i32_1 = arith.constant 0 : i32
    return %c0_i32, %c0_i32_0 : i32, i32
  }
  func.func @transform_11(%arg0: i32) -> (i32, i32) {
    %c0_i32 = arith.constant 0 : i32
    %c0_i32_0 = arith.constant 0 : i32
    %c0_i32_1 = arith.constant 0 : i32
    return %c0_i32, %c0_i32_0 : i32, i32
  }
  func.func @transform_12(%arg0: i32) -> (i32, i32) {
    %c0_i32 = arith.constant 0 : i32
    %c0_i32_0 = arith.constant 0 : i32
    %c0_i32_1 = arith.constant 0 : i32
    return %c0_i32, %c0_i32_0 : i32, i32
  }
  func.func @transform_13(%arg0: i32) -> (i32, i32) {
    %c0_i32 = arith.constant 0 : i32
    %c0_i32_0 = arith.constant 0 : i32
    return %arg0, %c0_i32 : i32, i32
  }
}

</mosaic_0001>

<llo_original>
// kernel: tpu_custom_call.1
$region0: #{tpu_custom_call.1}
  #allocation0 [shape = 'u32[]', space=smem, size = 0x4, offset = 0x4, fixed_abs, tag = 'smem constant byte address 0x4 - core index']
  #allocation1 [shape = 'u32[144,128]{1,0:T(1,128)}', space=vmem, size = 0x12000, scoped, tag = 'internal scratch']
  %s0 = inlined_call_operand.hbm [shape: bf16[8,1024], index: 0, kind: input, shape index: {}]
  %s1 = inlined_call_operand.hbm [shape: bf16[1024,256], index: 1, kind: input, shape index: {}]
  %s2 = inlined_call_operand.vmem [shape: f32[1,256], index: 2, kind: input, shape index: {}]
  %s3 = inlined_call_operand.hbm [shape: bf16[256,128], index: 3, kind: input, shape index: {}]
  %s4 = inlined_call_operand.vmem [shape: f32[1,128], index: 4, kind: input, shape index: {}]
  %s5 = inlined_call_operand.hbm [shape: bf16[128,128], index: 5, kind: input, shape index: {}]
  %s6 = inlined_call_operand.vmem [shape: f32[1,128], index: 6, kind: input, shape index: {}]
  %s7 = inlined_call_operand.hbm [shape: bf16[128,128], index: 7, kind: input, shape index: {}]
  %s8 = inlined_call_operand.vmem [shape: f32[1,128], index: 8, kind: input, shape index: {}]
  %s9 = inlined_call_operand.hbm [shape: bf16[128,128], index: 9, kind: input, shape index: {}]
  %s10 = inlined_call_operand.vmem [shape: f32[1,128], index: 10, kind: input, shape index: {}]
  %s11 = inlined_call_operand.hbm [shape: bf16[128,128], index: 11, kind: input, shape index: {}]
  %s12 = inlined_call_operand.vmem [shape: f32[1,128], index: 12, kind: input, shape index: {}]
  %s13 = inlined_call_operand.hbm [shape: f32[8,128], index: 13, kind: output, shape index: {}]
  %s14 = sld [smem:[#allocation0]]
  $region90: #{tpu_custom_call.1} parent=0
    _
  %s16 = ssub.s32 1, %s14
  %s17 = scalar_select 0, %s16, %s14
  $region1: #{tpu_custom_call.1} parent=0
    #allocation2 [shape = 'u8[16384]{0}', space=vmem, size = 0x4000, scoped, tag = 'input window, operand 0, single buffered']
    #allocation3 [shape = 's32[1]{0}', space=sflag, size = 0x4, scoped, tag = 'scoped memory for tpu_custom_call.1']
    #allocation4 [shape = 's32[1]{0}', space=sflag, size = 0x4, scoped, tag = 'scoped memory for tpu_custom_call.1']
    #allocation5 [shape = 'u8[524288]{0}', space=vmem, size = 0x80000, scoped, tag = 'input window, operand 1, single buffered']
    #allocation6 [shape = 's32[1]{0}', space=sflag, size = 0x4, scoped, tag = 'scoped memory for tpu_custom_call.1']
    #allocation7 [shape = 'u8[65536]{0}', space=vmem, size = 0x10000, scoped, tag = 'input window, operand 3, single buffered']
    #allocation8 [shape = 'u8[32768]{0}', space=vmem, size = 0x8000, scoped, tag = 'input window, operand 5, single buffered']
    #allocation9 [shape = 's32[1]{0}', space=sflag, size = 0x4, scoped, tag = 'scoped memory for tpu_custom_call.1']
    #allocation10 [shape = 'u8[32768]{0}', space=vmem, size = 0x8000, scoped, tag = 'input window, operand 7, single buffered']
    #allocation11 [shape = 'u8[32768]{0}', space=vmem, size = 0x8000, scoped, tag = 'input window, operand 9, single buffered']
    #allocation12 [shape = 's32[1]{0}', space=sflag, size = 0x4, scoped, tag = 'scoped memory for tpu_custom_call.1']
    #allocation13 [shape = 'u8[32768]{0}', space=vmem, size = 0x8000, scoped, tag = 'input window, operand 11, single buffered']
    #allocation14 [shape = 'u8[4096]{0}', space=vmem, size = 0x1000, scoped, tag = 'output window, operand 0, single buffered']
    %18 = vsyncpa [#allocation3], 0
    %19 = vsyncpa [#allocation6], 0
    %20 = vsyncpa [#allocation9], 0
    %21 = vsyncpa [#allocation12], 0
    %22 = vsyncpa [#allocation4], 0
    // Predicated region
    $region2: #{tpu_custom_call.1} parent=1 // pred_check
      _
    $region3: #{tpu_custom_call.1} parent=1 // pred_check_branch
      %24 = sbr.rel (0) target = $region5
    $region4: #{tpu_custom_call.1} parent=1 // pred_region
      %s26 = ssub.s32 512, 512
      %27 = vsyncadd [#allocation3], %s26
      %s29 = sshll.u32 [#allocation2], 4
      %s30 = int_to_ptr.vmem [resolvable:$true] %s29
      %32 = dma.hbm_to_vmem [thread:$0]  %s0, 512, %s30, [#allocation3]
    $region5: #{tpu_custom_call.1} parent=1 // pred_fallthru
      _
    // Predicated region
    $region6: #{tpu_custom_call.1} parent=1 // pred_check
      _
    $region7: #{tpu_custom_call.1} parent=1 // pred_check_branch
      %34 = sbr.rel (0) target = $region9
    $region8: #{tpu_custom_call.1} parent=1 // pred_region
      %s36 = ssub.s32 16384, 16384
      %37 = vsyncadd [#allocation6], %s36
      %s38 = sshll.u32 [#allocation5], 4
      %s39 = int_to_ptr.vmem [resolvable:$true] %s38
      %44 = dma.hbm_to_vmem [thread:$0]  %s1, 16384, %s39, [#allocation6], 128, 128, 8
    $region9: #{tpu_custom_call.1} parent=1 // pred_fallthru
      _
    // Predicated region
    $region10: #{tpu_custom_call.1} parent=1 // pred_check
      _
    $region11: #{tpu_custom_call.1} parent=1 // pred_check_branch
      %46 = sbr.rel (0) target = $region13
    $region12: #{tpu_custom_call.1} parent=1 // pred_region
      _
    $region13: #{tpu_custom_call.1} parent=1 // pred_fallthru
      _
    // Predicated region
    $region14: #{tpu_custom_call.1} parent=1 // pred_check
      _
    $region15: #{tpu_custom_call.1} parent=1 // pred_check_branch
      %48 = sbr.rel (0) target = $region17
    $region16: #{tpu_custom_call.1} parent=1 // pred_region
      %s50 = ssub.s32 2048, 2048
      %51 = vsyncadd [#allocation6], %s50
      %s52 = sshll.u32 [#allocation7], 4
      %s53 = int_to_ptr.vmem [resolvable:$true] %s52
      %58 = dma.hbm_to_vmem [thread:$0]  %s3, 2048, %s53, [#allocation6], 64, 64, 4
    $region17: #{tpu_custom_call.1} parent=1 // pred_fallthru
      _
    // Predicated region
    $region18: #{tpu_custom_call.1} parent=1 // pred_check
      _
    $region19: #{tpu_custom_call.1} parent=1 // pred_check_branch
      %60 = sbr.rel (0) target = $region21
    $region20: #{tpu_custom_call.1} parent=1 // pred_region
      _
    $region21: #{tpu_custom_call.1} parent=1 // pred_fallthru
      _
    // Predicated region
    $region22: #{tpu_custom_call.1} parent=1 // pred_check
      _
    $region23: #{tpu_custom_call.1} parent=1 // pred_check_branch
      %62 = sbr.rel (0) target = $region25
    $region24: #{tpu_custom_call.1} parent=1 // pred_region
      %s64 = ssub.s32 1024, 1024
      %65 = vsyncadd [#allocation9], %s64
      %s66 = sshll.u32 [#allocation8], 4
      %s67 = int_to_ptr.vmem [resolvable:$true] %s66
      %72 = dma.hbm_to_vmem [thread:$0]  %s5, 1024, %s67, [#allocation9], 64, 64, 4
    $region25: #{tpu_custom_call.1} parent=1 // pred_fallthru
      _
    // Predicated region
    $region26: #{tpu_custom_call.1} parent=1 // pred_check
      _
    $region27: #{tpu_custom_call.1} parent=1 // pred_check_branch
      %74 = sbr.rel (0) target = $region29
    $region28: #{tpu_custom_call.1} parent=1 // pred_region
      _
    $region29: #{tpu_custom_call.1} parent=1 // pred_fallthru
      _
    // Predicated region
    $region30: #{tpu_custom_call.1} parent=1 // pred_check
      _
    $region31: #{tpu_custom_call.1} parent=1 // pred_check_branch
      %76 = sbr.rel (0) target = $region33
    $region32: #{tpu_custom_call.1} parent=1 // pred_region
      %s78 = ssub.s32 1024, 1024
      %79 = vsyncadd [#allocation9], %s78
      %s80 = sshll.u32 [#allocation10], 4
      %s81 = int_to_ptr.vmem [resolvable:$true] %s80
      %86 = dma.hbm_to_vmem [thread:$0]  %s7, 1024, %s81, [#allocation9], 64, 64, 4
    $region33: #{tpu_custom_call.1} parent=1 // pred_fallthru
      _
    // Predicated region
    $region34: #{tpu_custom_call.1} parent=1 // pred_check
      _
    $region35: #{tpu_custom_call.1} parent=1 // pred_check_branch
      %88 = sbr.rel (0) target = $region37
    $region36: #{tpu_custom_call.1} parent=1 // pred_region
      _
    $region37: #{tpu_custom_call.1} parent=1 // pred_fallthru
      _
    // Predicated region
    $region38: #{tpu_custom_call.1} parent=1 // pred_check
      _
    $region39: #{tpu_custom_call.1} parent=1 // pred_check_branch
      %90 = sbr.rel (0) target = $region41
    $region40: #{tpu_custom_call.1} parent=1 // pred_region
      %s92 = ssub.s32 1024, 1024
      %93 = vsyncadd [#allocation12], %s92
      %s94 = sshll.u32 [#allocation11], 4
      %s95 = int_to_ptr.vmem [resolvable:$true] %s94
      %100 = dma.hbm_to_vmem [thread:$0]  %s9, 1024, %s95, [#allocation12], 64, 64, 4
    $region41: #{tpu_custom_call.1} parent=1 // pred_fallthru
      _
    // Predicated region
    $region42: #{tpu_custom_call.1} parent=1 // pred_check
      _
    $region43: #{tpu_custom_call.1} parent=1 // pred_check_branch
      %102 = sbr.rel (0) target = $region45
    $region44: #{tpu_custom_call.1} parent=1 // pred_region
      _
    $region45: #{tpu_custom_call.1} parent=1 // pred_fallthru
      _
    // Predicated region
    $region46: #{tpu_custom_call.1} parent=1 // pred_check
      _
    $region47: #{tpu_custom_call.1} parent=1 // pred_check_branch
      %104 = sbr.rel (0) target = $region49
    $region48: #{tpu_custom_call.1} parent=1 // pred_region
      %s106 = ssub.s32 1024, 1024
      %107 = vsyncadd [#allocation12], %s106
      %s108 = sshll.u32 [#allocation13], 4
      %s109 = int_to_ptr.vmem [resolvable:$true] %s108
      %114 = dma.hbm_to_vmem [thread:$0]  %s11, 1024, %s109, [#allocation12], 64, 64, 4
    $region49: #{tpu_custom_call.1} parent=1 // pred_fallthru
      _
    // Predicated region
    $region50: #{tpu_custom_call.1} parent=1 // pred_check
      _
    $region51: #{tpu_custom_call.1} parent=1 // pred_check_branch
      %116 = sbr.rel (0) target = $region53
    $region52: #{tpu_custom_call.1} parent=1 // pred_region
      _
    $region53: #{tpu_custom_call.1} parent=1 // pred_fallthru
      _
    // Predicated region
    $region54: #{tpu_custom_call.1} parent=1 // pred_check
      _
    $region55: #{tpu_custom_call.1} parent=1 // pred_check_branch
      %118 = sbr.rel (0) target = $region57
    $region56: #{tpu_custom_call.1} parent=1 // pred_region
      %119 = dma.done [#allocation3], 512
    $region57: #{tpu_custom_call.1} parent=1 // pred_fallthru
      _
    // Predicated region
    $region58: #{tpu_custom_call.1} parent=1 // pred_check
      _
    $region59: #{tpu_custom_call.1} parent=1 // pred_check_branch
      %121 = sbr.rel (0) target = $region61
    $region60: #{tpu_custom_call.1} parent=1 // pred_region
      %122 = dma.done [#allocation6], 16384
    $region61: #{tpu_custom_call.1} parent=1 // pred_fallthru
      _
    // Predicated region
    $region62: #{tpu_custom_call.1} parent=1 // pred_check
      _
    $region63: #{tpu_custom_call.1} parent=1 // pred_check_branch
      %124 = sbr.rel (0) target = $region65
    $region64: #{tpu_custom_call.1} parent=1 // pred_region
      %125 = dma.done [#allocation6], 2048
    $region65: #{tpu_custom_call.1} parent=1 // pred_fallthru
      _
    // Predicated region
    $region66: #{tpu_custom_call.1} parent=1 // pred_check
      _
    $region67: #{tpu_custom_call.1} parent=1 // pred_check_branch
      %127 = sbr.rel (0) target = $region69
    $region68: #{tpu_custom_call.1} parent=1 // pred_region
      %128 = dma.done [#allocation9], 1024
    $region69: #{tpu_custom_call.1} parent=1 // pred_fallthru
      _
    // Predicated region
    $region70: #{tpu_custom_call.1} parent=1 // pred_check
      _
    $region71: #{tpu_custom_call.1} parent=1 // pred_check_branch
      %130 = sbr.rel (0) target = $region73
    $region72: #{tpu_custom_call.1} parent=1 // pred_region
      %131 = dma.done [#allocation9], 1024
    $region73: #{tpu_custom_call.1} parent=1 // pred_fallthru
      _
    // Predicated region
    $region74: #{tpu_custom_call.1} parent=1 // pred_check
      _
    $region75: #{tpu_custom_call.1} parent=1 // pred_check_branch
      %133 = sbr.rel (0) target = $region77
    $region76: #{tpu_custom_call.1} parent=1 // pred_region
      %134 = dma.done [#allocation12], 1024
    $region77: #{tpu_custom_call.1} parent=1 // pred_fallthru
      _
    // Predicated region
    $region78: #{tpu_custom_call.1} parent=1 // pred_check
      _
    $region79: #{tpu_custom_call.1} parent=1 // pred_check_branch
      %136 = sbr.rel (0) target = $region81
    $region80: #{tpu_custom_call.1} parent=1 // pred_region
      %137 = dma.done [#allocation12], 1024
    $region81: #{tpu_custom_call.1} parent=1 // pred_fallthru
      _
    %v139 = vld [vmem:[#allocation2] sm:$0xff]
    %v140 = vld [vmem:[#allocation2 + $0x8] sm:$0xff]
    %v141 = vld [vmem:[#allocation2 + $0x10] sm:$0xff]
    %v142 = vld [vmem:[#allocation2 + $0x18] sm:$0xff]
    %v143 = vld [vmem:[#allocation5] sm:$0xff]
    %v144 = vld [vmem:[#allocation5 + $0x8] sm:$0xff]
    %v145 = vld [vmem:[#allocation5 + $0x10] sm:$0xff]
    %v146 = vld [vmem:[#allocation5 + $0x18] sm:$0xff]
    %v147 = vld [vmem:[#allocation5 + $0x20] sm:$0xff]
    %v148 = vld [vmem:[#allocation5 + $0x28] sm:$0xff]
    %v149 = vld [vmem:[#allocation5 + $0x30] sm:$0xff]
    %v150 = vld [vmem:[#allocation5 + $0x38] sm:$0xff]
    %v151 = vld [vmem:[#allocation5 + $0x40] sm:$0xff]
    %v152 = vld [vmem:[#allocation5 + $0x48] sm:$0xff]
    %v153 = vld [vmem:[#allocation5 + $0x50] sm:$0xff]
    %v154 = vld [vmem:[#allocation5 + $0x58] sm:$0xff]
    %v155 = vld [vmem:[#allocation5 + $0x60] sm:$0xff]
    %v156 = vld [vmem:[#allocation5 + $0x68] sm:$0xff]
    %v157 = vld [vmem:[#allocation5 + $0x70] sm:$0xff]
    %v158 = vld [vmem:[#allocation5 + $0x78] sm:$0xff]
    %v159 = vld [vmem:[#allocation5 + $0x80] sm:$0xff]
    %v160 = vld [vmem:[#allocation5 + $0x88] sm:$0xff]
    %v161 = vld [vmem:[#allocation5 + $0x90] sm:$0xff]
    %v162 = vld [vmem:[#allocation5 + $0x98] sm:$0xff]
    %v163 = vld [vmem:[#allocation5 + $0xa0] sm:$0xff]
    %v164 = vld [vmem:[#allocation5 + $0xa8] sm:$0xff]
    %v165 = vld [vmem:[#allocation5 + $0xb0] sm:$0xff]
    %v166 = vld [vmem:[#allocation5 + $0xb8] sm:$0xff]
    %v167 = vld [vmem:[#allocation5 + $0xc0] sm:$0xff]
    %v168 = vld [vmem:[#allocation5 + $0xc8] sm:$0xff]
    %v169 = vld [vmem:[#allocation5 + $0xd0] sm:$0xff]
    %v170 = vld [vmem:[#allocation5 + $0xd8] sm:$0xff]
    %v171 = vld [vmem:[#allocation5 + $0xe0] sm:$0xff]
    %v172 = vld [vmem:[#allocation5 + $0xe8] sm:$0xff]
    %v173 = vld [vmem:[#allocation5 + $0xf0] sm:$0xff]
    %v174 = vld [vmem:[#allocation5 + $0xf8] sm:$0xff]
    %v175 = vld [vmem:[#allocation5 + $0x100] sm:$0xff]
    %v176 = vld [vmem:[#allocation5 + $0x108] sm:$0xff]
    %v177 = vld [vmem:[#allocation5 + $0x110] sm:$0xff]
    %v178 = vld [vmem:[#allocation5 + $0x118] sm:$0xff]
    %v179 = vld [vmem:[#allocation5 + $0x120] sm:$0xff]
    %v180 = vld [vmem:[#allocation5 + $0x128] sm:$0xff]
    %v181 = vld [vmem:[#allocation5 + $0x130] sm:$0xff]
    %v182 = vld [vmem:[#allocation5 + $0x138] sm:$0xff]
    %v183 = vld [vmem:[#allocation5 + $0x140] sm:$0xff]
    %v184 = vld [vmem:[#allocation5 + $0x148] sm:$0xff]
    %v185 = vld [vmem:[#allocation5 + $0x150] sm:$0xff]
    %v186 = vld [vmem:[#allocation5 + $0x158] sm:$0xff]
    %v187 = vld [vmem:[#allocation5 + $0x160] sm:$0xff]
    %v188 = vld [vmem:[#allocation5 + $0x168] sm:$0xff]
    %v189 = vld [vmem:[#allocation5 + $0x170] sm:$0xff]
    %v190 = vld [vmem:[#allocation5 + $0x178] sm:$0xff]
    %v191 = vld [vmem:[#allocation5 + $0x180] sm:$0xff]
    %v192 = vld [vmem:[#allocation5 + $0x188] sm:$0xff]
    %v193 = vld [vmem:[#allocation5 + $0x190] sm:$0xff]
    %v194 = vld [vmem:[#allocation5 + $0x198] sm:$0xff]
    %v195 = vld [vmem:[#allocation5 + $0x1a0] sm:$0xff]
    %v196 = vld [vmem:[#allocation5 + $0x1a8] sm:$0xff]
    %v197 = vld [vmem:[#allocation5 + $0x1b0] sm:$0xff]
    %v198 = vld [vmem:[#allocation5 + $0x1b8] sm:$0xff]
    %v199 = vld [vmem:[#allocation5 + $0x1c0] sm:$0xff]
    %v200 = vld [vmem:[#allocation5 + $0x1c8] sm:$0xff]
    %v201 = vld [vmem:[#allocation5 + $0x1d0] sm:$0xff]
    %v202 = vld [vmem:[#allocation5 + $0x1d8] sm:$0xff]
    %v203 = vld [vmem:[#allocation5 + $0x1e0] sm:$0xff]
    %v204 = vld [vmem:[#allocation5 + $0x1e8] sm:$0xff]
    %v205 = vld [vmem:[#allocation5 + $0x1f0] sm:$0xff]
    %v206 = vld [vmem:[#allocation5 + $0x1f8] sm:$0xff]
    %v207 = vld [vmem:[#allocation5 + $0x200] sm:$0xff]
    %v208 = vld [vmem:[#allocation5 + $0x208] sm:$0xff]
    %v209 = vld [vmem:[#allocation5 + $0x210] sm:$0xff]
    %v210 = vld [vmem:[#allocation5 + $0x218] sm:$0xff]
    %v211 = vld [vmem:[#allocation5 + $0x220] sm:$0xff]
    %v212 = vld [vmem:[#allocation5 + $0x228] sm:$0xff]
    %v213 = vld [vmem:[#allocation5 + $0x230] sm:$0xff]
    %v214 = vld [vmem:[#allocation5 + $0x238] sm:$0xff]
    %v215 = vld [vmem:[#allocation5 + $0x240] sm:$0xff]
    %v216 = vld [vmem:[#allocation5 + $0x248] sm:$0xff]
    %v217 = vld [vmem:[#allocation5 + $0x250] sm:$0xff]
    %v218 = vld [vmem:[#allocation5 + $0x258] sm:$0xff]
    %v219 = vld [vmem:[#allocation5 + $0x260] sm:$0xff]
    %v220 = vld [vmem:[#allocation5 + $0x268] sm:$0xff]
    %v221 = vld [vmem:[#allocation5 + $0x270] sm:$0xff]
    %v222 = vld [vmem:[#allocation5 + $0x278] sm:$0xff]
    %v223 = vld [vmem:[#allocation5 + $0x280] sm:$0xff]
    %v224 = vld [vmem:[#allocation5 + $0x288] sm:$0xff]
    %v225 = vld [vmem:[#allocation5 + $0x290] sm:$0xff]
    %v226 = vld [vmem:[#allocation5 + $0x298] sm:$0xff]
    %v227 = vld [vmem:[#allocation5 + $0x2a0] sm:$0xff]
    %v228 = vld [vmem:[#allocation5 + $0x2a8] sm:$0xff]
    %v229 = vld [vmem:[#allocation5 + $0x2b0] sm:$0xff]
    %v230 = vld [vmem:[#allocation5 + $0x2b8] sm:$0xff]
    %v231 = vld [vmem:[#allocation5 + $0x2c0] sm:$0xff]
    %v232 = vld [vmem:[#allocation5 + $0x2c8] sm:$0xff]
    %v233 = vld [vmem:[#allocation5 + $0x2d0] sm:$0xff]
    %v234 = vld [vmem:[#allocation5 + $0x2d8] sm:$0xff]
    %v235 = vld [vmem:[#allocation5 + $0x2e0] sm:$0xff]
    %v236 = vld [vmem:[#allocation5 + $0x2e8] sm:$0xff]
    %v237 = vld [vmem:[#allocation5 + $0x2f0] sm:$0xff]
    %v238 = vld [vmem:[#allocation5 + $0x2f8] sm:$0xff]
    %v239 = vld [vmem:[#allocation5 + $0x300] sm:$0xff]
    %v240 = vld [vmem:[#allocation5 + $0x308] sm:$0xff]
    %v241 = vld [vmem:[#allocation5 + $0x310] sm:$0xff]
    %v242 = vld [vmem:[#allocation5 + $0x318] sm:$0xff]
    %v243 = vld [vmem:[#allocation5 + $0x320] sm:$0xff]
    %v244 = vld [vmem:[#allocation5 + $0x328] sm:$0xff]
    %v245 = vld [vmem:[#allocation5 + $0x330] sm:$0xff]
    %v246 = vld [vmem:[#allocation5 + $0x338] sm:$0xff]
    %v247 = vld [vmem:[#allocation5 + $0x340] sm:$0xff]
    %v248 = vld [vmem:[#allocation5 + $0x348] sm:$0xff]
    %v249 = vld [vmem:[#allocation5 + $0x350] sm:$0xff]
    %v250 = vld [vmem:[#allocation5 + $0x358] sm:$0xff]
    %v251 = vld [vmem:[#allocation5 + $0x360] sm:$0xff]
    %v252 = vld [vmem:[#allocation5 + $0x368] sm:$0xff]
    %v253 = vld [vmem:[#allocation5 + $0x370] sm:$0xff]
    %v254 = vld [vmem:[#allocation5 + $0x378] sm:$0xff]
    %v255 = vld [vmem:[#allocation5 + $0x380] sm:$0xff]
    %v256 = vld [vmem:[#allocation5 + $0x388] sm:$0xff]
    %v257 = vld [vmem:[#allocation5 + $0x390] sm:$0xff]
    %v258 = vld [vmem:[#allocation5 + $0x398] sm:$0xff]
    %v259 = vld [vmem:[#allocation5 + $0x3a0] sm:$0xff]
    %v260 = vld [vmem:[#allocation5 + $0x3a8] sm:$0xff]
    %v261 = vld [vmem:[#allocation5 + $0x3b0] sm:$0xff]
    %v262 = vld [vmem:[#allocation5 + $0x3b8] sm:$0xff]
    %v263 = vld [vmem:[#allocation5 + $0x3c0] sm:$0xff]
    %v264 = vld [vmem:[#allocation5 + $0x3c8] sm:$0xff]
    %v265 = vld [vmem:[#allocation5 + $0x3d0] sm:$0xff]
    %v266 = vld [vmem:[#allocation5 + $0x3d8] sm:$0xff]
    %v267 = vld [vmem:[#allocation5 + $0x3e0] sm:$0xff]
    %v268 = vld [vmem:[#allocation5 + $0x3e8] sm:$0xff]
    %v269 = vld [vmem:[#allocation5 + $0x3f0] sm:$0xff]
    %v270 = vld [vmem:[#allocation5 + $0x3f8] sm:$0xff]
    %v271 = vld [vmem:[%s2] sm:$0x3]
    %v273 = vlaneseq
    %v274 = vshrl.u32 %v273, 7
    %v275 = vsub.s32 0, %v274
    %v276 = vrot.slane %v271, %v275
    %v277 = vlaneseq
    %v278 = vshrl.u32 %v277, 7
    %v279 = vsub.s32 1, %v278
    %v280 = vrot.slane %v271, %v279
    %v287 = vunpack.c.l.b16 %v139
    %v288 = vunpack.c.h.b16 %v139
    %v289 = vunpack.c.l.b16 %v140
    %v290 = vunpack.c.h.b16 %v140
    %v291 = vunpack.c.l.b16 %v141
    %v292 = vunpack.c.h.b16 %v141
    %v293 = vunpack.c.l.b16 %v142
    %v294 = vunpack.c.h.b16 %v142
    %v295 = vpack.c.b16 %v287, %v287
    %v296 = vpack.c.b16 %v288, %v288
    %v297 = vpack.c.b16 %v289, %v289
    %v298 = vpack.c.b16 %v290, %v290
    %v299 = vpack.c.b16 %v291, %v291
    %v300 = vpack.c.b16 %v292, %v292
    %v301 = vpack.c.b16 %v293, %v293
    %v302 = vpack.c.b16 %v294, %v294
    %v439 = vunpack.c.l.b16 %v143
    %v440 = vunpack.c.h.b16 %v143
    %v441 = vunpack.c.l.b16 %v144
    %v442 = vunpack.c.h.b16 %v144
    %v443 = vunpack.c.l.b16 %v145
    %v444 = vunpack.c.h.b16 %v145
    %v445 = vunpack.c.l.b16 %v146
    %v446 = vunpack.c.h.b16 %v146
    %v447 = vunpack.c.l.b16 %v147
    %v448 = vunpack.c.h.b16 %v147
    %v449 = vunpack.c.l.b16 %v148
    %v450 = vunpack.c.h.b16 %v148
    %v451 = vunpack.c.l.b16 %v149
    %v452 = vunpack.c.h.b16 %v149
    %v453 = vunpack.c.l.b16 %v150
    %v454 = vunpack.c.h.b16 %v150
    %v455 = vunpack.c.l.b16 %v151
    %v456 = vunpack.c.h.b16 %v151
    %v457 = vunpack.c.l.b16 %v152
    %v458 = vunpack.c.h.b16 %v152
    %v459 = vunpack.c.l.b16 %v153
    %v460 = vunpack.c.h.b16 %v153
    %v461 = vunpack.c.l.b16 %v154
    %v462 = vunpack.c.h.b16 %v154
    %v463 = vunpack.c.l.b16 %v155
    %v464 = vunpack.c.h.b16 %v155
    %v465 = vunpack.c.l.b16 %v156
    %v466 = vunpack.c.h.b16 %v156
    %v467 = vunpack.c.l.b16 %v157
    %v468 = vunpack.c.h.b16 %v157
    %v469 = vunpack.c.l.b16 %v158
    %v470 = vunpack.c.h.b16 %v158
    %v471 = vunpack.c.l.b16 %v159
    %v472 = vunpack.c.h.b16 %v159
    %v473 = vunpack.c.l.b16 %v160
    %v474 = vunpack.c.h.b16 %v160
    %v475 = vunpack.c.l.b16 %v161
    %v476 = vunpack.c.h.b16 %v161
    %v477 = vunpack.c.l.b16 %v162
    %v478 = vunpack.c.h.b16 %v162
    %v479 = vunpack.c.l.b16 %v163
    %v480 = vunpack.c.h.b16 %v163
    %v481 = vunpack.c.l.b16 %v164
    %v482 = vunpack.c.h.b16 %v164
    %v483 = vunpack.c.l.b16 %v165
    %v484 = vunpack.c.h.b16 %v165
    %v485 = vunpack.c.l.b16 %v166
    %v486 = vunpack.c.h.b16 %v166
    %v487 = vunpack.c.l.b16 %v167
    %v488 = vunpack.c.h.b16 %v167
    %v489 = vunpack.c.l.b16 %v168
    %v490 = vunpack.c.h.b16 %v168
    %v491 = vunpack.c.l.b16 %v169
    %v492 = vunpack.c.h.b16 %v169
    %v493 = vunpack.c.l.b16 %v170
    %v494 = vunpack.c.h.b16 %v170
    %v495 = vunpack.c.l.b16 %v171
    %v496 = vunpack.c.h.b16 %v171
    %v497 = vunpack.c.l.b16 %v172
    %v498 = vunpack.c.h.b16 %v172
    %v499 = vunpack.c.l.b16 %v173
    %v500 = vunpack.c.h.b16 %v173
    %v501 = vunpack.c.l.b16 %v174
    %v502 = vunpack.c.h.b16 %v174
    %v503 = vunpack.c.l.b16 %v175
    %v504 = vunpack.c.h.b16 %v175
    %v505 = vunpack.c.l.b16 %v176
    %v506 = vunpack.c.h.b16 %v176
    %v507 = vunpack.c.l.b16 %v177
    %v508 = vunpack.c.h.b16 %v177
    %v509 = vunpack.c.l.b16 %v178
    %v510 = vunpack.c.h.b16 %v178
    %v511 = vunpack.c.l.b16 %v179
    %v512 = vunpack.c.h.b16 %v179
    %v513 = vunpack.c.l.b16 %v180
    %v514 = vunpack.c.h.b16 %v180
    %v515 = vunpack.c.l.b16 %v181
    %v516 = vunpack.c.h.b16 %v181
    %v517 = vunpack.c.l.b16 %v182
    %v518 = vunpack.c.h.b16 %v182
    %v519 = vunpack.c.l.b16 %v183
    %v520 = vunpack.c.h.b16 %v183
    %v521 = vunpack.c.l.b16 %v184
    %v522 = vunpack.c.h.b16 %v184
    %v523 = vunpack.c.l.b16 %v185
    %v524 = vunpack.c.h.b16 %v185
    %v525 = vunpack.c.l.b16 %v186
    %v526 = vunpack.c.h.b16 %v186
    %v527 = vunpack.c.l.b16 %v187
    %v528 = vunpack.c.h.b16 %v187
    %v529 = vunpack.c.l.b16 %v188
    %v530 = vunpack.c.h.b16 %v188
    %v531 = vunpack.c.l.b16 %v189
    %v532 = vunpack.c.h.b16 %v189
    %v533 = vunpack.c.l.b16 %v190
    %v534 = vunpack.c.h.b16 %v190
    %v535 = vunpack.c.l.b16 %v191
    %v536 = vunpack.c.h.b16 %v191
    %v537 = vunpack.c.l.b16 %v192
    %v538 = vunpack.c.h.b16 %v192
    %v539 = vunpack.c.l.b16 %v193
    %v540 = vunpack.c.h.b16 %v193
    %v541 = vunpack.c.l.b16 %v194
    %v542 = vunpack.c.h.b16 %v194
    %v543 = vunpack.c.l.b16 %v195
    %v544 = vunpack.c.h.b16 %v195
    %v545 = vunpack.c.l.b16 %v196
    %v546 = vunpack.c.h.b16 %v196
    %v547 = vunpack.c.l.b16 %v197
    %v548 = vunpack.c.h.b16 %v197
    %v549 = vunpack.c.l.b16 %v198
    %v550 = vunpack.c.h.b16 %v198
    %v551 = vunpack.c.l.b16 %v199
    %v552 = vunpack.c.h.b16 %v199
    %v553 = vunpack.c.l.b16 %v200
    %v554 = vunpack.c.h.b16 %v200
    %v555 = vunpack.c.l.b16 %v201
    %v556 = vunpack.c.h.b16 %v201
    %v557 = vunpack.c.l.b16 %v202
    %v558 = vunpack.c.h.b16 %v202
    %v559 = vunpack.c.l.b16 %v203
    %v560 = vunpack.c.h.b16 %v203
    %v561 = vunpack.c.l.b16 %v204
    %v562 = vunpack.c.h.b16 %v204
    %v563 = vunpack.c.l.b16 %v205
    %v564 = vunpack.c.h.b16 %v205
    %v565 = vunpack.c.l.b16 %v206
    %v566 = vunpack.c.h.b16 %v206
    %v567 = vunpack.c.l.b16 %v207
    %v568 = vunpack.c.h.b16 %v207
    %v569 = vunpack.c.l.b16 %v208
    %v570 = vunpack.c.h.b16 %v208
    %v571 = vunpack.c.l.b16 %v209
    %v572 = vunpack.c.h.b16 %v209
    %v573 = vunpack.c.l.b16 %v210
    %v574 = vunpack.c.h.b16 %v210
    %v575 = vunpack.c.l.b16 %v211
    %v576 = vunpack.c.h.b16 %v211
    %v577 = vunpack.c.l.b16 %v212
    %v578 = vunpack.c.h.b16 %v212
    %v579 = vunpack.c.l.b16 %v213
    %v580 = vunpack.c.h.b16 %v213
    %v581 = vunpack.c.l.b16 %v214
    %v582 = vunpack.c.h.b16 %v214
    %v583 = vunpack.c.l.b16 %v215
    %v584 = vunpack.c.h.b16 %v215
    %v585 = vunpack.c.l.b16 %v216
    %v586 = vunpack.c.h.b16 %v216
    %v587 = vunpack.c.l.b16 %v217
    %v588 = vunpack.c.h.b16 %v217
    %v589 = vunpack.c.l.b16 %v218
    %v590 = vunpack.c.h.b16 %v218
    %v591 = vunpack.c.l.b16 %v219
    %v592 = vunpack.c.h.b16 %v219
    %v593 = vunpack.c.l.b16 %v220
    %v594 = vunpack.c.h.b16 %v220
    %v595 = vunpack.c.l.b16 %v221
    %v596 = vunpack.c.h.b16 %v221
    %v597 = vunpack.c.l.b16 %v222
    %v598 = vunpack.c.h.b16 %v222
    %v599 = vunpack.c.l.b16 %v223
    %v600 = vunpack.c.h.b16 %v223
    %v601 = vunpack.c.l.b16 %v224
    %v602 = vunpack.c.h.b16 %v224
    %v603 = vunpack.c.l.b16 %v225
    %v604 = vunpack.c.h.b16 %v225
    %v605 = vunpack.c.l.b16 %v226
    %v606 = vunpack.c.h.b16 %v226
    %v607 = vunpack.c.l.b16 %v227
    %v608 = vunpack.c.h.b16 %v227
    %v609 = vunpack.c.l.b16 %v228
    %v610 = vunpack.c.h.b16 %v228
    %v611 = vunpack.c.l.b16 %v229
    %v612 = vunpack.c.h.b16 %v229
    %v613 = vunpack.c.l.b16 %v230
    %v614 = vunpack.c.h.b16 %v230
    %v615 = vunpack.c.l.b16 %v231
    %v616 = vunpack.c.h.b16 %v231
    %v617 = vunpack.c.l.b16 %v232
    %v618 = vunpack.c.h.b16 %v232
    %v619 = vunpack.c.l.b16 %v233
    %v620 = vunpack.c.h.b16 %v233
    %v621 = vunpack.c.l.b16 %v234
    %v622 = vunpack.c.h.b16 %v234
    %v623 = vunpack.c.l.b16 %v235
    %v624 = vunpack.c.h.b16 %v235
    %v625 = vunpack.c.l.b16 %v236
    %v626 = vunpack.c.h.b16 %v236
    %v627 = vunpack.c.l.b16 %v237
    %v628 = vunpack.c.h.b16 %v237
    %v629 = vunpack.c.l.b16 %v238
    %v630 = vunpack.c.h.b16 %v238
    %v631 = vunpack.c.l.b16 %v239
    %v632 = vunpack.c.h.b16 %v239
    %v633 = vunpack.c.l.b16 %v240
    %v634 = vunpack.c.h.b16 %v240
    %v635 = vunpack.c.l.b16 %v241
    %v636 = vunpack.c.h.b16 %v241
    %v637 = vunpack.c.l.b16 %v242
    %v638 = vunpack.c.h.b16 %v242
    %v639 = vunpack.c.l.b16 %v243
    %v640 = vunpack.c.h.b16 %v243
    %v641 = vunpack.c.l.b16 %v244
    %v642 = vunpack.c.h.b16 %v244
    %v643 = vunpack.c.l.b16 %v245
    %v644 = vunpack.c.h.b16 %v245
    %v645 = vunpack.c.l.b16 %v246
    %v646 = vunpack.c.h.b16 %v246
    %v647 = vunpack.c.l.b16 %v247
    %v648 = vunpack.c.h.b16 %v247
    %v649 = vunpack.c.l.b16 %v248
    %v650 = vunpack.c.h.b16 %v248
    %v651 = vunpack.c.l.b16 %v249
    %v652 = vunpack.c.h.b16 %v249
    %v653 = vunpack.c.l.b16 %v250
    %v654 = vunpack.c.h.b16 %v250
    %v655 = vunpack.c.l.b16 %v251
    %v656 = vunpack.c.h.b16 %v251
    %v657 = vunpack.c.l.b16 %v252
    %v658 = vunpack.c.h.b16 %v252
    %v659 = vunpack.c.l.b16 %v253
    %v660 = vunpack.c.h.b16 %v253
    %v661 = vunpack.c.l.b16 %v254
    %v662 = vunpack.c.h.b16 %v254
    %v663 = vunpack.c.l.b16 %v255
    %v664 = vunpack.c.h.b16 %v255
    %v665 = vunpack.c.l.b16 %v256
    %v666 = vunpack.c.h.b16 %v256
    %v667 = vunpack.c.l.b16 %v257
    %v668 = vunpack.c.h.b16 %v257
    %v669 = vunpack.c.l.b16 %v258
    %v670 = vunpack.c.h.b16 %v258
    %v671 = vunpack.c.l.b16 %v259
    %v672 = vunpack.c.h.b16 %v259
    %v673 = vunpack.c.l.b16 %v260
    %v674 = vunpack.c.h.b16 %v260
    %v675 = vunpack.c.l.b16 %v261
    %v676 = vunpack.c.h.b16 %v261
    %v677 = vunpack.c.l.b16 %v262
    %v678 = vunpack.c.h.b16 %v262
    %v679 = vunpack.c.l.b16 %v263
    %v680 = vunpack.c.h.b16 %v263
    %v681 = vunpack.c.l.b16 %v264
    %v682 = vunpack.c.h.b16 %v264
    %v683 = vunpack.c.l.b16 %v265
    %v684 = vunpack.c.h.b16 %v265
    %v685 = vunpack.c.l.b16 %v266
    %v686 = vunpack.c.h.b16 %v266
    %v687 = vunpack.c.l.b16 %v267
    %v688 = vunpack.c.h.b16 %v267
    %v689 = vunpack.c.l.b16 %v268
    %v690 = vunpack.c.h.b16 %v268
    %v691 = vunpack.c.l.b16 %v269
    %v692 = vunpack.c.h.b16 %v269
    %v693 = vunpack.c.l.b16 %v270
    %v694 = vunpack.c.h.b16 %v270
    %v695 = vpack.c.b16 %v441, %v439
    %v696 = vpack.c.b16 %v442, %v440
    %v697 = vpack.c.b16 %v445, %v443
    %v698 = vpack.c.b16 %v446, %v444
    %v699 = vpack.c.b16 %v449, %v447
    %v700 = vpack.c.b16 %v450, %v448
    %v701 = vpack.c.b16 %v453, %v451
    %v702 = vpack.c.b16 %v454, %v452
    %v703 = vpack.c.b16 %v457, %v455
    %v704 = vpack.c.b16 %v458, %v456
    %v705 = vpack.c.b16 %v461, %v459
    %v706 = vpack.c.b16 %v462, %v460
    %v707 = vpack.c.b16 %v465, %v463
    %v708 = vpack.c.b16 %v466, %v464
    %v709 = vpack.c.b16 %v469, %v467
    %v710 = vpack.c.b16 %v470, %v468
    %v711 = vpack.c.b16 %v473, %v471
    %v712 = vpack.c.b16 %v474, %v472
    %v713 = vpack.c.b16 %v477, %v475
    %v714 = vpack.c.b16 %v478, %v476
    %v715 = vpack.c.b16 %v481, %v479
    %v716 = vpack.c.b16 %v482, %v480
    %v717 = vpack.c.b16 %v485, %v483
    %v718 = vpack.c.b16 %v486, %v484
    %v719 = vpack.c.b16 %v489, %v487
    %v720 = vpack.c.b16 %v490, %v488
    %v721 = vpack.c.b16 %v493, %v491
    %v722 = vpack.c.b16 %v494, %v492
    %v723 = vpack.c.b16 %v497, %v495
    %v724 = vpack.c.b16 %v498, %v496
    %v725 = vpack.c.b16 %v501, %v499
    %v726 = vpack.c.b16 %v502, %v500
    %v727 = vpack.c.b16 %v505, %v503
    %v728 = vpack.c.b16 %v506, %v504
    %v729 = vpack.c.b16 %v509, %v507
    %v730 = vpack.c.b16 %v510, %v508
    %v731 = vpack.c.b16 %v513, %v511
    %v732 = vpack.c.b16 %v514, %v512
    %v733 = vpack.c.b16 %v517, %v515
    %v734 = vpack.c.b16 %v518, %v516
    %v735 = vpack.c.b16 %v521, %v519
    %v736 = vpack.c.b16 %v522, %v520
    %v737 = vpack.c.b16 %v525, %v523
    %v738 = vpack.c.b16 %v526, %v524
    %v739 = vpack.c.b16 %v529, %v527
    %v740 = vpack.c.b16 %v530, %v528
    %v741 = vpack.c.b16 %v533, %v531
    %v742 = vpack.c.b16 %v534, %v532
    %v743 = vpack.c.b16 %v537, %v535
    %v744 = vpack.c.b16 %v538, %v536
    %v745 = vpack.c.b16 %v541, %v539
    %v746 = vpack.c.b16 %v542, %v540
    %v747 = vpack.c.b16 %v545, %v543
    %v748 = vpack.c.b16 %v546, %v544
    %v749 = vpack.c.b16 %v549, %v547
    %v750 = vpack.c.b16 %v550, %v548
    %v751 = vpack.c.b16 %v553, %v551
    %v752 = vpack.c.b16 %v554, %v552
    %v753 = vpack.c.b16 %v557, %v555
    %v754 = vpack.c.b16 %v558, %v556
    %v755 = vpack.c.b16 %v561, %v559
    %v756 = vpack.c.b16 %v562, %v560
    %v757 = vpack.c.b16 %v565, %v563
    %v758 = vpack.c.b16 %v566, %v564
    %v759 = vpack.c.b16 %v569, %v567
    %v760 = vpack.c.b16 %v570, %v568
    %v761 = vpack.c.b16 %v573, %v571
    %v762 = vpack.c.b16 %v574, %v572
    %v763 = vpack.c.b16 %v577, %v575
    %v764 = vpack.c.b16 %v578, %v576
    %v765 = vpack.c.b16 %v581, %v579
    %v766 = vpack.c.b16 %v582, %v580
    %v767 = vpack.c.b16 %v585, %v583
    %v768 = vpack.c.b16 %v586, %v584
    %v769 = vpack.c.b16 %v589, %v587
    %v770 = vpack.c.b16 %v590, %v588
    %v771 = vpack.c.b16 %v593, %v591
    %v772 = vpack.c.b16 %v594, %v592
    %v773 = vpack.c.b16 %v597, %v595
    %v774 = vpack.c.b16 %v598, %v596
    %v775 = vpack.c.b16 %v601, %v599
    %v776 = vpack.c.b16 %v602, %v600
    %v777 = vpack.c.b16 %v605, %v603
    %v778 = vpack.c.b16 %v606, %v604
    %v779 = vpack.c.b16 %v609, %v607
    %v780 = vpack.c.b16 %v610, %v608
    %v781 = vpack.c.b16 %v613, %v611
    %v782 = vpack.c.b16 %v614, %v612
    %v783 = vpack.c.b16 %v617, %v615
    %v784 = vpack.c.b16 %v618, %v616
    %v785 = vpack.c.b16 %v621, %v619
    %v786 = vpack.c.b16 %v622, %v620
    %v787 = vpack.c.b16 %v625, %v623
    %v788 = vpack.c.b16 %v626, %v624
    %v789 = vpack.c.b16 %v629, %v627
    %v790 = vpack.c.b16 %v630, %v628
    %v791 = vpack.c.b16 %v633, %v631
    %v792 = vpack.c.b16 %v634, %v632
    %v793 = vpack.c.b16 %v637, %v635
    %v794 = vpack.c.b16 %v638, %v636
    %v795 = vpack.c.b16 %v641, %v639
    %v796 = vpack.c.b16 %v642, %v640
    %v797 = vpack.c.b16 %v645, %v643
    %v798 = vpack.c.b16 %v646, %v644
    %v799 = vpack.c.b16 %v649, %v647
    %v800 = vpack.c.b16 %v650, %v648
    %v801 = vpack.c.b16 %v653, %v651
    %v802 = vpack.c.b16 %v654, %v652
    %v803 = vpack.c.b16 %v657, %v655
    %v804 = vpack.c.b16 %v658, %v656
    %v805 = vpack.c.b16 %v661, %v659
    %v806 = vpack.c.b16 %v662, %v660
    %v807 = vpack.c.b16 %v665, %v663
    %v808 = vpack.c.b16 %v666, %v664
    %v809 = vpack.c.b16 %v669, %v667
    %v810 = vpack.c.b16 %v670, %v668
    %v811 = vpack.c.b16 %v673, %v671
    %v812 = vpack.c.b16 %v674, %v672
    %v813 = vpack.c.b16 %v677, %v675
    %v814 = vpack.c.b16 %v678, %v676
    %v815 = vpack.c.b16 %v681, %v679
    %v816 = vpack.c.b16 %v682, %v680
    %v817 = vpack.c.b16 %v685, %v683
    %v818 = vpack.c.b16 %v686, %v684
    %v819 = vpack.c.b16 %v689, %v687
    %v820 = vpack.c.b16 %v690, %v688
    %v821 = vpack.c.b16 %v693, %v691
    %v822 = vpack.c.b16 %v694, %v692
    %951 = vmatprep.subr.bf16.mxu0 %v710
    %952 = vmatpush1.bf16.msra.mxu0 %v709
    %953 = vmatprep.subr.bf16.mxu0 %v708
    %954 = vmatpush1.bf16.msra.mxu0 %v707
    %955 = vmatprep.subr.bf16.mxu0 %v706
    %956 = vmatpush1.bf16.msra.mxu0 %v705
    %957 = vmatprep.subr.bf16.mxu0 %v704
    %958 = vmatpush1.bf16.msra.mxu0 %v703
    %959 = vmatprep.subr.bf16.mxu0 %v702
    %960 = vmatpush1.bf16.msra.mxu0 %v701
    %961 = vmatprep.subr.bf16.mxu0 %v700
    %962 = vmatpush1.bf16.msra.mxu0 %v699
    %963 = vmatprep.subr.bf16.mxu0 %v698
    %964 = vmatpush1.bf16.msra.mxu0 %v697
    %965 = vmatprep.subr.bf16.mxu0 %v696
    %966 = vmatpush1.bf16.msra.mxu0 %v695
    %967 = vmatprep.subr.bf16.mxu0 %v726
    %968 = vmatpush2.bf16.msra.mxu0 %v725
    %969 = vmatprep.subr.bf16.mxu0 %v724
    %970 = vmatpush2.bf16.msra.mxu0 %v723
    %971 = vmatprep.subr.bf16.mxu0 %v722
    %972 = vmatpush2.bf16.msra.mxu0 %v721
    %973 = vmatprep.subr.bf16.mxu0 %v720
    %974 = vmatpush2.bf16.msra.mxu0 %v719
    %975 = vmatprep.subr.bf16.mxu0 %v718
    %976 = vmatpush2.bf16.msra.mxu0 %v717
    %977 = vmatprep.subr.bf16.mxu0 %v716
    %978 = vmatpush2.bf16.msra.mxu0 %v715
    %979 = vmatprep.subr.bf16.mxu0 %v714
    %980 = vmatpush2.bf16.msra.mxu0 %v713
    %981 = vmatprep.subr.bf16.mxu0 %v712
    %982 = vmatpush2.bf16.msra.mxu0 %v711
    %983 = vmatprep.mubr.bf16.mxu0 %v296
    %984 = vmatmul.mubr.bf16.gmra.mxu0 %v295
    %v985 = vpop.f32.mrf.mxu0
    %v986 = vadd.f32 %v276, %v985
    %v987 = vpop.f32.mrf.mxu0
    %v988 = vadd.f32 %v280, %v987
    %v989 = vpop.f32.mrf.mxu0
    %v990 = vpop.f32.mrf.mxu0
    %991 = vdwg.mxu0
    %992 = vmatprep.subr.bf16.mxu0 %v742
    %993 = vmatpush1.bf16.msra.mxu0 %v741
    %994 = vmatprep.subr.bf16.mxu0 %v740
    %995 = vmatpush1.bf16.msra.mxu0 %v739
    %996 = vmatprep.subr.bf16.mxu0 %v738
    %997 = vmatpush1.bf16.msra.mxu0 %v737
    %998 = vmatprep.subr.bf16.mxu0 %v736
    %999 = vmatpush1.bf16.msra.mxu0 %v735
    %1000 = vmatprep.subr.bf16.mxu0 %v734
    %1001 = vmatpush1.bf16.msra.mxu0 %v733
    %1002 = vmatprep.subr.bf16.mxu0 %v732
    %1003 = vmatpush1.bf16.msra.mxu0 %v731
    %1004 = vmatprep.subr.bf16.mxu0 %v730
    %1005 = vmatpush1.bf16.msra.mxu0 %v729
    %1006 = vmatprep.subr.bf16.mxu0 %v728
    %1007 = vmatpush1.bf16.msra.mxu0 %v727
    %1008 = vmatprep.subr.bf16.mxu0 %v758
    %1009 = vmatpush2.bf16.msra.mxu0 %v757
    %1010 = vmatprep.subr.bf16.mxu0 %v756
    %1011 = vmatpush2.bf16.msra.mxu0 %v755
    %1012 = vmatprep.subr.bf16.mxu0 %v754
    %1013 = vmatpush2.bf16.msra.mxu0 %v753
    %1014 = vmatprep.subr.bf16.mxu0 %v752
    %1015 = vmatpush2.bf16.msra.mxu0 %v751
    %1016 = vmatprep.subr.bf16.mxu0 %v750
    %1017 = vmatpush2.bf16.msra.mxu0 %v749
    %1018 = vmatprep.subr.bf16.mxu0 %v748
    %1019 = vmatpush2.bf16.msra.mxu0 %v747
    %1020 = vmatprep.subr.bf16.mxu0 %v746
    %1021 = vmatpush2.bf16.msra.mxu0 %v745
    %1022 = vmatprep.subr.bf16.mxu0 %v744
    %1023 = vmatpush2.bf16.msra.mxu0 %v743
    %1024 = vmatprep.mubr.bf16.mxu0 %v298
    %1025 = vmatmul.mubr.bf16.gmra.mxu0 %v297
    %v1026 = vpop.f32.mrf.mxu0
    %v1027 = vadd.f32 %v986, %v1026
    %v1028 = vpop.f32.mrf.mxu0
    %v1029 = vadd.f32 %v988, %v1028
    %v1030 = vpop.f32.mrf.mxu0
    %v1031 = vpop.f32.mrf.mxu0
    %1032 = vdwg.mxu0
    %1033 = vmatprep.subr.bf16.mxu0 %v774
    %1034 = vmatpush1.bf16.msra.mxu0 %v773
    %1035 = vmatprep.subr.bf16.mxu0 %v772
    %1036 = vmatpush1.bf16.msra.mxu0 %v771
    %1037 = vmatprep.subr.bf16.mxu0 %v770
    %1038 = vmatpush1.bf16.msra.mxu0 %v769
    %1039 = vmatprep.subr.bf16.mxu0 %v768
    %1040 = vmatpush1.bf16.msra.mxu0 %v767
    %1041 = vmatprep.subr.bf16.mxu0 %v766
    %1042 = vmatpush1.bf16.msra.mxu0 %v765
    %1043 = vmatprep.subr.bf16.mxu0 %v764
    %1044 = vmatpush1.bf16.msra.mxu0 %v763
    %1045 = vmatprep.subr.bf16.mxu0 %v762
    %1046 = vmatpush1.bf16.msra.mxu0 %v761
    %1047 = vmatprep.subr.bf16.mxu0 %v760
    %1048 = vmatpush1.bf16.msra.mxu0 %v759
    %1049 = vmatprep.subr.bf16.mxu0 %v790
    %1050 = vmatpush2.bf16.msra.mxu0 %v789
    %1051 = vmatprep.subr.bf16.mxu0 %v788
    %1052 = vmatpush2.bf16.msra.mxu0 %v787
    %1053 = vmatprep.subr.bf16.mxu0 %v786
    %1054 = vmatpush2.bf16.msra.mxu0 %v785
    %1055 = vmatprep.subr.bf16.mxu0 %v784
    %1056 = vmatpush2.bf16.msra.mxu0 %v783
    %1057 = vmatprep.subr.bf16.mxu0 %v782
    %1058 = vmatpush2.bf16.msra.mxu0 %v781
    %1059 = vmatprep.subr.bf16.mxu0 %v780
    %1060 = vmatpush2.bf16.msra.mxu0 %v779
    %1061 = vmatprep.subr.bf16.mxu0 %v778
    %1062 = vmatpush2.bf16.msra.mxu0 %v777
    %1063 = vmatprep.subr.bf16.mxu0 %v776
    %1064 = vmatpush2.bf16.msra.mxu0 %v775
    %1065 = vmatprep.mubr.bf16.mxu0 %v300
    %1066 = vmatmul.mubr.bf16.gmra.mxu0 %v299
    %v1067 = vpop.f32.mrf.mxu0
    %v1068 = vadd.f32 %v1027, %v1067
    %v1069 = vpop.f32.mrf.mxu0
    %v1070 = vadd.f32 %v1029, %v1069
    %v1071 = vpop.f32.mrf.mxu0
    %v1072 = vpop.f32.mrf.mxu0
    %1073 = vdwg.mxu0
    %1074 = vmatprep.subr.bf16.mxu0 %v806
    %1075 = vmatpush1.bf16.msra.mxu0 %v805
    %1076 = vmatprep.subr.bf16.mxu0 %v804
    %1077 = vmatpush1.bf16.msra.mxu0 %v803
    %1078 = vmatprep.subr.bf16.mxu0 %v802
    %1079 = vmatpush1.bf16.msra.mxu0 %v801
    %1080 = vmatprep.subr.bf16.mxu0 %v800
    %1081 = vmatpush1.bf16.msra.mxu0 %v799
    %1082 = vmatprep.subr.bf16.mxu0 %v798
    %1083 = vmatpush1.bf16.msra.mxu0 %v797
    %1084 = vmatprep.subr.bf16.mxu0 %v796
    %1085 = vmatpush1.bf16.msra.mxu0 %v795
    %1086 = vmatprep.subr.bf16.mxu0 %v794
    %1087 = vmatpush1.bf16.msra.mxu0 %v793
    %1088 = vmatprep.subr.bf16.mxu0 %v792
    %1089 = vmatpush1.bf16.msra.mxu0 %v791
    %1090 = vmatprep.subr.bf16.mxu0 %v822
    %1091 = vmatpush2.bf16.msra.mxu0 %v821
    %1092 = vmatprep.subr.bf16.mxu0 %v820
    %1093 = vmatpush2.bf16.msra.mxu0 %v819
    %1094 = vmatprep.subr.bf16.mxu0 %v818
    %1095 = vmatpush2.bf16.msra.mxu0 %v817
    %1096 = vmatprep.subr.bf16.mxu0 %v816
    %1097 = vmatpush2.bf16.msra.mxu0 %v815
    %1098 = vmatprep.subr.bf16.mxu0 %v814
    %1099 = vmatpush2.bf16.msra.mxu0 %v813
    %1100 = vmatprep.subr.bf16.mxu0 %v812
    %1101 = vmatpush2.bf16.msra.mxu0 %v811
    %1102 = vmatprep.subr.bf16.mxu0 %v810
    %1103 = vmatpush2.bf16.msra.mxu0 %v809
    %1104 = vmatprep.subr.bf16.mxu0 %v808
    %1105 = vmatpush2.bf16.msra.mxu0 %v807
    %1106 = vmatprep.mubr.bf16.mxu0 %v302
    %1107 = vmatmul.mubr.bf16.gmra.mxu0 %v301
    %v1108 = vpop.f32.mrf.mxu0
    %v1109 = vadd.f32 %v1068, %v1108
    %v1110 = vpop.f32.mrf.mxu0
    %v1111 = vadd.f32 %v1070, %v1110
    %v1112 = vpop.f32.mrf.mxu0
    %v1113 = vpop.f32.mrf.mxu0
    %1114 = vdwg.mxu0
    %v1115 = vmax.f32 %v1109, 0.0
    %v1116 = vmax.f32 %v1111, 0.0
    %v1117 = vpack.c.bf16 %v1115, %v1115
    %v1118 = vpack.c.bf16 %v1116, %v1116
    %v1119 = vld [vmem:[#allocation7] sm:$0xf]
    %v1120 = vld [vmem:[#allocation7 + $0x4] sm:$0xf]
    %v1121 = vld [vmem:[#allocation7 + $0x8] sm:$0xf]
    %v1122 = vld [vmem:[#allocation7 + $0xc] sm:$0xf]
    %v1123 = vld [vmem:[#allocation7 + $0x10] sm:$0xf]
    %v1124 = vld [vmem:[#allocation7 + $0x14] sm:$0xf]
    %v1125 = vld [vmem:[#allocation7 + $0x18] sm:$0xf]
    %v1126 = vld [vmem:[#allocation7 + $0x1c] sm:$0xf]
    %v1127 = vld [vmem:[#allocation7 + $0x20] sm:$0xf]
    %v1128 = vld [vmem:[#allocation7 + $0x24] sm:$0xf]
    %v1129 = vld [vmem:[#allocation7 + $0x28] sm:$0xf]
    %v1130 = vld [vmem:[#allocation7 + $0x2c] sm:$0xf]
    %v1131 = vld [vmem:[#allocation7 + $0x30] sm:$0xf]
    %v1132 = vld [vmem:[#allocation7 + $0x34] sm:$0xf]
    %v1133 = vld [vmem:[#allocation7 + $0x38] sm:$0xf]
    %v1134 = vld [vmem:[#allocation7 + $0x3c] sm:$0xf]
    %v1135 = vld [vmem:[#allocation7 + $0x40] sm:$0xf]
    %v1136 = vld [vmem:[#allocation7 + $0x44] sm:$0xf]
    %v1137 = vld [vmem:[#allocation7 + $0x48] sm:$0xf]
    %v1138 = vld [vmem:[#allocation7 + $0x4c] sm:$0xf]
    %v1139 = vld [vmem:[#allocation7 + $0x50] sm:$0xf]
    %v1140 = vld [vmem:[#allocation7 + $0x54] sm:$0xf]
    %v1141 = vld [vmem:[#allocation7 + $0x58] sm:$0xf]
    %v1142 = vld [vmem:[#allocation7 + $0x5c] sm:$0xf]
    %v1143 = vld [vmem:[#allocation7 + $0x60] sm:$0xf]
    %v1144 = vld [vmem:[#allocation7 + $0x64] sm:$0xf]
    %v1145 = vld [vmem:[#allocation7 + $0x68] sm:$0xf]
    %v1146 = vld [vmem:[#allocation7 + $0x6c] sm:$0xf]
    %v1147 = vld [vmem:[#allocation7 + $0x70] sm:$0xf]
    %v1148 = vld [vmem:[#allocation7 + $0x74] sm:$0xf]
    %v1149 = vld [vmem:[#allocation7 + $0x78] sm:$0xf]
    %v1150 = vld [vmem:[#allocation7 + $0x7c] sm:$0xf]
    %v1151 = vld [vmem:[%s4] sm:$0x1]
    %v1153 = vlaneseq
    %v1154 = vshrl.u32 %v1153, 7
    %v1155 = vsub.s32 0, %v1154
    %v1156 = vrot.slane %v1151, %v1155
    %v1190 = vunpack.c.l.b16 %v1119
    %v1191 = vunpack.c.l.b16 %v1120
    %v1192 = vunpack.c.l.b16 %v1121
    %v1193 = vunpack.c.l.b16 %v1122
    %v1194 = vunpack.c.l.b16 %v1123
    %v1195 = vunpack.c.l.b16 %v1124
    %v1196 = vunpack.c.l.b16 %v1125
    %v1197 = vunpack.c.l.b16 %v1126
    %v1198 = vunpack.c.l.b16 %v1127
    %v1199 = vunpack.c.l.b16 %v1128
    %v1200 = vunpack.c.l.b16 %v1129
    %v1201 = vunpack.c.l.b16 %v1130
    %v1202 = vunpack.c.l.b16 %v1131
    %v1203 = vunpack.c.l.b16 %v1132
    %v1204 = vunpack.c.l.b16 %v1133
    %v1205 = vunpack.c.l.b16 %v1134
    %v1206 = vunpack.c.l.b16 %v1135
    %v1207 = vunpack.c.l.b16 %v1136
    %v1208 = vunpack.c.l.b16 %v1137
    %v1209 = vunpack.c.l.b16 %v1138
    %v1210 = vunpack.c.l.b16 %v1139
    %v1211 = vunpack.c.l.b16 %v1140
    %v1212 = vunpack.c.l.b16 %v1141
    %v1213 = vunpack.c.l.b16 %v1142
    %v1214 = vunpack.c.l.b16 %v1143
    %v1215 = vunpack.c.l.b16 %v1144
    %v1216 = vunpack.c.l.b16 %v1145
    %v1217 = vunpack.c.l.b16 %v1146
    %v1218 = vunpack.c.l.b16 %v1147
    %v1219 = vunpack.c.l.b16 %v1148
    %v1220 = vunpack.c.l.b16 %v1149
    %v1221 = vunpack.c.l.b16 %v1150
    %v1222 = vpack.c.b16 %v1191, %v1190
    %v1223 = vpack.c.b16 %v1193, %v1192
    %v1224 = vpack.c.b16 %v1195, %v1194
    %v1225 = vpack.c.b16 %v1197, %v1196
    %v1226 = vpack.c.b16 %v1199, %v1198
    %v1227 = vpack.c.b16 %v1201, %v1200
    %v1228 = vpack.c.b16 %v1203, %v1202
    %v1229 = vpack.c.b16 %v1205, %v1204
    %v1230 = vpack.c.b16 %v1207, %v1206
    %v1231 = vpack.c.b16 %v1209, %v1208
    %v1232 = vpack.c.b16 %v1211, %v1210
    %v1233 = vpack.c.b16 %v1213, %v1212
    %v1234 = vpack.c.b16 %v1215, %v1214
    %v1235 = vpack.c.b16 %v1217, %v1216
    %v1236 = vpack.c.b16 %v1219, %v1218
    %v1237 = vpack.c.b16 %v1221, %v1220
    %1254 = vmatprep.subr.bf16.mxu0 0
    %1255 = vmatpush1.bf16.msra.mxu0 %v1229
    %1256 = vmatprep.subr.bf16.mxu0 0
    %1257 = vmatpush1.bf16.msra.mxu0 %v1228
    %1258 = vmatprep.subr.bf16.mxu0 0
    %1259 = vmatpush1.bf16.msra.mxu0 %v1227
    %1260 = vmatprep.subr.bf16.mxu0 0
    %1261 = vmatpush1.bf16.msra.mxu0 %v1226
    %1262 = vmatprep.subr.bf16.mxu0 0
    %1263 = vmatpush1.bf16.msra.mxu0 %v1225
    %1264 = vmatprep.subr.bf16.mxu0 0
    %1265 = vmatpush1.bf16.msra.mxu0 %v1224
    %1266 = vmatprep.subr.bf16.mxu0 0
    %1267 = vmatpush1.bf16.msra.mxu0 %v1223
    %1268 = vmatprep.subr.bf16.mxu0 0
    %1269 = vmatpush1.bf16.msra.mxu0 %v1222
    %1270 = vmatprep.subr.bf16.mxu0 0
    %1271 = vmatpush2.bf16.msra.mxu0 %v1237
    %1272 = vmatprep.subr.bf16.mxu0 0
    %1273 = vmatpush2.bf16.msra.mxu0 %v1236
    %1274 = vmatprep.subr.bf16.mxu0 0
    %1275 = vmatpush2.bf16.msra.mxu0 %v1235
    %1276 = vmatprep.subr.bf16.mxu0 0
    %1277 = vmatpush2.bf16.msra.mxu0 %v1234
    %1278 = vmatprep.subr.bf16.mxu0 0
    %1279 = vmatpush2.bf16.msra.mxu0 %v1233
    %1280 = vmatprep.subr.bf16.mxu0 0
    %1281 = vmatpush2.bf16.msra.mxu0 %v1232
    %1282 = vmatprep.subr.bf16.mxu0 0
    %1283 = vmatpush2.bf16.msra.mxu0 %v1231
    %1284 = vmatprep.subr.bf16.mxu0 0
    %1285 = vmatpush2.bf16.msra.mxu0 %v1230
    %1286 = vmatprep.mubr.bf16.mxu0 %v1118
    %1287 = vmatmul.mubr.bf16.gmra.mxu0 %v1117
    %v1288 = vpop.f32.mrf.mxu0
    %v1289 = vadd.f32 %v1156, %v1288
    %v1290 = vpop.f32.mrf.mxu0
    %v1291 = vpop.f32.mrf.mxu0
    %v1292 = vpop.f32.mrf.mxu0
    %1293 = vdwg.mxu0
    %v1294 = vmax.f32 %v1289, 0.0
    %v1295 = vpack.c.bf16 %v1294, %v1294
    %v1296 = vld [vmem:[#allocation8] sm:$0xf]
    %v1297 = vld [vmem:[#allocation8 + $0x4] sm:$0xf]
    %v1298 = vld [vmem:[#allocation8 + $0x8] sm:$0xf]
    %v1299 = vld [vmem:[#allocation8 + $0xc] sm:$0xf]
    %v1300 = vld [vmem:[#allocation8 + $0x10] sm:$0xf]
    %v1301 = vld [vmem:[#allocation8 + $0x14] sm:$0xf]
    %v1302 = vld [vmem:[#allocation8 + $0x18] sm:$0xf]
    %v1303 = vld [vmem:[#allocation8 + $0x1c] sm:$0xf]
    %v1304 = vld [vmem:[#allocation8 + $0x20] sm:$0xf]
    %v1305 = vld [vmem:[#allocation8 + $0x24] sm:$0xf]
    %v1306 = vld [vmem:[#allocation8 + $0x28] sm:$0xf]
    %v1307 = vld [vmem:[#allocation8 + $0x2c] sm:$0xf]
    %v1308 = vld [vmem:[#allocation8 + $0x30] sm:$0xf]
    %v1309 = vld [vmem:[#allocation8 + $0x34] sm:$0xf]
    %v1310 = vld [vmem:[#allocation8 + $0x38] sm:$0xf]
    %v1311 = vld [vmem:[#allocation8 + $0x3c] sm:$0xf]
    %v1312 = vld [vmem:[%s6] sm:$0x1]
    %v1314 = vlaneseq
    %v1315 = vshrl.u32 %v1314, 7
    %v1316 = vsub.s32 0, %v1315
    %v1317 = vrot.slane %v1312, %v1316
    %v1335 = vunpack.c.l.b16 %v1296
    %v1336 = vunpack.c.l.b16 %v1297
    %v1337 = vunpack.c.l.b16 %v1298
    %v1338 = vunpack.c.l.b16 %v1299
    %v1339 = vunpack.c.l.b16 %v1300
    %v1340 = vunpack.c.l.b16 %v1301
    %v1341 = vunpack.c.l.b16 %v1302
    %v1342 = vunpack.c.l.b16 %v1303
    %v1343 = vunpack.c.l.b16 %v1304
    %v1344 = vunpack.c.l.b16 %v1305
    %v1345 = vunpack.c.l.b16 %v1306
    %v1346 = vunpack.c.l.b16 %v1307
    %v1347 = vunpack.c.l.b16 %v1308
    %v1348 = vunpack.c.l.b16 %v1309
    %v1349 = vunpack.c.l.b16 %v1310
    %v1350 = vunpack.c.l.b16 %v1311
    %v1351 = vpack.c.b16 %v1336, %v1335
    %v1352 = vpack.c.b16 %v1338, %v1337
    %v1353 = vpack.c.b16 %v1340, %v1339
    %v1354 = vpack.c.b16 %v1342, %v1341
    %v1355 = vpack.c.b16 %v1344, %v1343
    %v1356 = vpack.c.b16 %v1346, %v1345
    %v1357 = vpack.c.b16 %v1348, %v1347
    %v1358 = vpack.c.b16 %v1350, %v1349
    %1367 = vmatprep.subr.bf16.mxu0 0
    %1368 = vmatpush1.bf16.msra.mxu0 %v1358
    %1369 = vmatprep.subr.bf16.mxu0 0
    %1370 = vmatpush1.bf16.msra.mxu0 %v1357
    %1371 = vmatprep.subr.bf16.mxu0 0
    %1372 = vmatpush1.bf16.msra.mxu0 %v1356
    %1373 = vmatprep.subr.bf16.mxu0 0
    %1374 = vmatpush1.bf16.msra.mxu0 %v1355
    %1375 = vmatprep.subr.bf16.mxu0 0
    %1376 = vmatpush1.bf16.msra.mxu0 %v1354
    %1377 = vmatprep.subr.bf16.mxu0 0
    %1378 = vmatpush1.bf16.msra.mxu0 %v1353
    %1379 = vmatprep.subr.bf16.mxu0 0
    %1380 = vmatpush1.bf16.msra.mxu0 %v1352
    %1381 = vmatprep.subr.bf16.mxu0 0
    %1382 = vmatpush1.bf16.msra.mxu0 %v1351
    %1383 = vmatprep.subr.bf16.mxu0 0
    %1384 = vmatpush2.bf16.msra.mxu0 0
    %1385 = vmatprep.subr.bf16.mxu0 0
    %1386 = vmatpush2.bf16.msra.mxu0 0
    %1387 = vmatprep.subr.bf16.mxu0 0
    %1388 = vmatpush2.bf16.msra.mxu0 0
    %1389 = vmatprep.subr.bf16.mxu0 0
    %1390 = vmatpush2.bf16.msra.mxu0 0
    %1391 = vmatprep.subr.bf16.mxu0 0
    %1392 = vmatpush2.bf16.msra.mxu0 0
    %1393 = vmatprep.subr.bf16.mxu0 0
    %1394 = vmatpush2.bf16.msra.mxu0 0
    %1395 = vmatprep.subr.bf16.mxu0 0
    %1396 = vmatpush2.bf16.msra.mxu0 0
    %1397 = vmatprep.subr.bf16.mxu0 0
    %1398 = vmatpush2.bf16.msra.mxu0 0
    %1399 = vmatprep.mubr.bf16.mxu0 0
    %1400 = vmatmul.mubr.bf16.gmra.mxu0 %v1295
    %v1401 = vpop.f32.mrf.mxu0
    %v1402 = vadd.f32 %v1317, %v1401
    %v1403 = vpop.f32.mrf.mxu0
    %v1404 = vpop.f32.mrf.mxu0
    %v1405 = vpop.f32.mrf.mxu0
    %1406 = vdwg.mxu0
    %v1407 = vmax.f32 %v1402, 0.0
    %v1408 = vpack.c.bf16 %v1407, %v1407
    %v1409 = vld [vmem:[#allocation10] sm:$0xf]
    %v1410 = vld [vmem:[#allocation10 + $0x4] sm:$0xf]
    %v1411 = vld [vmem:[#allocation10 + $0x8] sm:$0xf]
    %v1412 = vld [vmem:[#allocation10 + $0xc] sm:$0xf]
    %v1413 = vld [vmem:[#allocation10 + $0x10] sm:$0xf]
    %v1414 = vld [vmem:[#allocation10 + $0x14] sm:$0xf]
    %v1415 = vld [vmem:[#allocation10 + $0x18] sm:$0xf]
    %v1416 = vld [vmem:[#allocation10 + $0x1c] sm:$0xf]
    %v1417 = vld [vmem:[#allocation10 + $0x20] sm:$0xf]
    %v1418 = vld [vmem:[#allocation10 + $0x24] sm:$0xf]
    %v1419 = vld [vmem:[#allocation10 + $0x28] sm:$0xf]
    %v1420 = vld [vmem:[#allocation10 + $0x2c] sm:$0xf]
    %v1421 = vld [vmem:[#allocation10 + $0x30] sm:$0xf]
    %v1422 = vld [vmem:[#allocation10 + $0x34] sm:$0xf]
    %v1423 = vld [vmem:[#allocation10 + $0x38] sm:$0xf]
    %v1424 = vld [vmem:[#allocation10 + $0x3c] sm:$0xf]
    %v1425 = vld [vmem:[%s8] sm:$0x1]
    %v1427 = vlaneseq
    %v1428 = vshrl.u32 %v1427, 7
    %v1429 = vsub.s32 0, %v1428
    %v1430 = vrot.slane %v1425, %v1429
    %v1448 = vunpack.c.l.b16 %v1409
    %v1449 = vunpack.c.l.b16 %v1410
    %v1450 = vunpack.c.l.b16 %v1411
    %v1451 = vunpack.c.l.b16 %v1412
    %v1452 = vunpack.c.l.b16 %v1413
    %v1453 = vunpack.c.l.b16 %v1414
    %v1454 = vunpack.c.l.b16 %v1415
    %v1455 = vunpack.c.l.b16 %v1416
    %v1456 = vunpack.c.l.b16 %v1417
    %v1457 = vunpack.c.l.b16 %v1418
    %v1458 = vunpack.c.l.b16 %v1419
    %v1459 = vunpack.c.l.b16 %v1420
    %v1460 = vunpack.c.l.b16 %v1421
    %v1461 = vunpack.c.l.b16 %v1422
    %v1462 = vunpack.c.l.b16 %v1423
    %v1463 = vunpack.c.l.b16 %v1424
    %v1464 = vpack.c.b16 %v1449, %v1448
    %v1465 = vpack.c.b16 %v1451, %v1450
    %v1466 = vpack.c.b16 %v1453, %v1452
    %v1467 = vpack.c.b16 %v1455, %v1454
    %v1468 = vpack.c.b16 %v1457, %v1456
    %v1469 = vpack.c.b16 %v1459, %v1458
    %v1470 = vpack.c.b16 %v1461, %v1460
    %v1471 = vpack.c.b16 %v1463, %v1462
    %1480 = vmatprep.subr.bf16.mxu0 0
    %1481 = vmatpush1.bf16.msra.mxu0 %v1471
    %1482 = vmatprep.subr.bf16.mxu0 0
    %1483 = vmatpush1.bf16.msra.mxu0 %v1470
    %1484 = vmatprep.subr.bf16.mxu0 0
    %1485 = vmatpush1.bf16.msra.mxu0 %v1469
    %1486 = vmatprep.subr.bf16.mxu0 0
    %1487 = vmatpush1.bf16.msra.mxu0 %v1468
    %1488 = vmatprep.subr.bf16.mxu0 0
    %1489 = vmatpush1.bf16.msra.mxu0 %v1467
    %1490 = vmatprep.subr.bf16.mxu0 0
    %1491 = vmatpush1.bf16.msra.mxu0 %v1466
    %1492 = vmatprep.subr.bf16.mxu0 0
    %1493 = vmatpush1.bf16.msra.mxu0 %v1465
    %1494 = vmatprep.subr.bf16.mxu0 0
    %1495 = vmatpush1.bf16.msra.mxu0 %v1464
    %1496 = vmatprep.subr.bf16.mxu0 0
    %1497 = vmatpush2.bf16.msra.mxu0 0
    %1498 = vmatprep.subr.bf16.mxu0 0
    %1499 = vmatpush2.bf16.msra.mxu0 0
    %1500 = vmatprep.subr.bf16.mxu0 0
    %1501 = vmatpush2.bf16.msra.mxu0 0
    %1502 = vmatprep.subr.bf16.mxu0 0
    %1503 = vmatpush2.bf16.msra.mxu0 0
    %1504 = vmatprep.subr.bf16.mxu0 0
    %1505 = vmatpush2.bf16.msra.mxu0 0
    %1506 = vmatprep.subr.bf16.mxu0 0
    %1507 = vmatpush2.bf16.msra.mxu0 0
    %1508 = vmatprep.subr.bf16.mxu0 0
    %1509 = vmatpush2.bf16.msra.mxu0 0
    %1510 = vmatprep.subr.bf16.mxu0 0
    %1511 = vmatpush2.bf16.msra.mxu0 0
    %1512 = vmatprep.mubr.bf16.mxu0 0
    %1513 = vmatmul.mubr.bf16.gmra.mxu0 %v1408
    %v1514 = vpop.f32.mrf.mxu0
    %v1515 = vadd.f32 %v1430, %v1514
    %v1516 = vpop.f32.mrf.mxu0
    %v1517 = vpop.f32.mrf.mxu0
    %v1518 = vpop.f32.mrf.mxu0
    %1519 = vdwg.mxu0
    %v1520 = vmax.f32 %v1515, 0.0
    %v1521 = vpack.c.bf16 %v1520, %v1520
    %v1522 = vld [vmem:[#allocation11] sm:$0xf]
    %v1523 = vld [vmem:[#allocation11 + $0x4] sm:$0xf]
    %v1524 = vld [vmem:[#allocation11 + $0x8] sm:$0xf]
    %v1525 = vld [vmem:[#allocation11 + $0xc] sm:$0xf]
    %v1526 = vld [vmem:[#allocation11 + $0x10] sm:$0xf]
    %v1527 = vld [vmem:[#allocation11 + $0x14] sm:$0xf]
    %v1528 = vld [vmem:[#allocation11 + $0x18] sm:$0xf]
    %v1529 = vld [vmem:[#allocation11 + $0x1c] sm:$0xf]
    %v1530 = vld [vmem:[#allocation11 + $0x20] sm:$0xf]
    %v1531 = vld [vmem:[#allocation11 + $0x24] sm:$0xf]
    %v1532 = vld [vmem:[#allocation11 + $0x28] sm:$0xf]
    %v1533 = vld [vmem:[#allocation11 + $0x2c] sm:$0xf]
    %v1534 = vld [vmem:[#allocation11 + $0x30] sm:$0xf]
    %v1535 = vld [vmem:[#allocation11 + $0x34] sm:$0xf]
    %v1536 = vld [vmem:[#allocation11 + $0x38] sm:$0xf]
    %v1537 = vld [vmem:[#allocation11 + $0x3c] sm:$0xf]
    %v1538 = vld [vmem:[%s10] sm:$0x1]
    %v1540 = vlaneseq
    %v1541 = vshrl.u32 %v1540, 7
    %v1542 = vsub.s32 0, %v1541
    %v1543 = vrot.slane %v1538, %v1542
    %v1561 = vunpack.c.l.b16 %v1522
    %v1562 = vunpack.c.l.b16 %v1523
    %v1563 = vunpack.c.l.b16 %v1524
    %v1564 = vunpack.c.l.b16 %v1525
    %v1565 = vunpack.c.l.b16 %v1526
    %v1566 = vunpack.c.l.b16 %v1527
    %v1567 = vunpack.c.l.b16 %v1528
    %v1568 = vunpack.c.l.b16 %v1529
    %v1569 = vunpack.c.l.b16 %v1530
    %v1570 = vunpack.c.l.b16 %v1531
    %v1571 = vunpack.c.l.b16 %v1532
    %v1572 = vunpack.c.l.b16 %v1533
    %v1573 = vunpack.c.l.b16 %v1534
    %v1574 = vunpack.c.l.b16 %v1535
    %v1575 = vunpack.c.l.b16 %v1536
    %v1576 = vunpack.c.l.b16 %v1537
    %v1577 = vpack.c.b16 %v1562, %v1561
    %v1578 = vpack.c.b16 %v1564, %v1563
    %v1579 = vpack.c.b16 %v1566, %v1565
    %v1580 = vpack.c.b16 %v1568, %v1567
    %v1581 = vpack.c.b16 %v1570, %v1569
    %v1582 = vpack.c.b16 %v1572, %v1571
    %v1583 = vpack.c.b16 %v1574, %v1573
    %v1584 = vpack.c.b16 %v1576, %v1575
    %1593 = vmatprep.subr.bf16.mxu0 0
    %1594 = vmatpush1.bf16.msra.mxu0 %v1584
    %1595 = vmatprep.subr.bf16.mxu0 0
    %1596 = vmatpush1.bf16.msra.mxu0 %v1583
    %1597 = vmatprep.subr.bf16.mxu0 0
    %1598 = vmatpush1.bf16.msra.mxu0 %v1582
    %1599 = vmatprep.subr.bf16.mxu0 0
    %1600 = vmatpush1.bf16.msra.mxu0 %v1581
    %1601 = vmatprep.subr.bf16.mxu0 0
    %1602 = vmatpush1.bf16.msra.mxu0 %v1580
    %1603 = vmatprep.subr.bf16.mxu0 0
    %1604 = vmatpush1.bf16.msra.mxu0 %v1579
    %1605 = vmatprep.subr.bf16.mxu0 0
    %1606 = vmatpush1.bf16.msra.mxu0 %v1578
    %1607 = vmatprep.subr.bf16.mxu0 0
    %1608 = vmatpush1.bf16.msra.mxu0 %v1577
    %1609 = vmatprep.subr.bf16.mxu0 0
    %1610 = vmatpush2.bf16.msra.mxu0 0
    %1611 = vmatprep.subr.bf16.mxu0 0
    %1612 = vmatpush2.bf16.msra.mxu0 0
    %1613 = vmatprep.subr.bf16.mxu0 0
    %1614 = vmatpush2.bf16.msra.mxu0 0
    %1615 = vmatprep.subr.bf16.mxu0 0
    %1616 = vmatpush2.bf16.msra.mxu0 0
    %1617 = vmatprep.subr.bf16.mxu0 0
    %1618 = vmatpush2.bf16.msra.mxu0 0
    %1619 = vmatprep.subr.bf16.mxu0 0
    %1620 = vmatpush2.bf16.msra.mxu0 0
    %1621 = vmatprep.subr.bf16.mxu0 0
    %1622 = vmatpush2.bf16.msra.mxu0 0
    %1623 = vmatprep.subr.bf16.mxu0 0
    %1624 = vmatpush2.bf16.msra.mxu0 0
    %1625 = vmatprep.mubr.bf16.mxu0 0
    %1626 = vmatmul.mubr.bf16.gmra.mxu0 %v1521
    %v1627 = vpop.f32.mrf.mxu0
    %v1628 = vadd.f32 %v1543, %v1627
    %v1629 = vpop.f32.mrf.mxu0
    %v1630 = vpop.f32.mrf.mxu0
    %v1631 = vpop.f32.mrf.mxu0
    %1632 = vdwg.mxu0
    %v1633 = vmax.f32 %v1628, 0.0
    %v1634 = vpack.c.bf16 %v1633, %v1633
    %v1635 = vld [vmem:[#allocation13] sm:$0xf]
    %v1636 = vld [vmem:[#allocation13 + $0x4] sm:$0xf]
    %v1637 = vld [vmem:[#allocation13 + $0x8] sm:$0xf]
    %v1638 = vld [vmem:[#allocation13 + $0xc] sm:$0xf]
    %v1639 = vld [vmem:[#allocation13 + $0x10] sm:$0xf]
    %v1640 = vld [vmem:[#allocation13 + $0x14] sm:$0xf]
    %v1641 = vld [vmem:[#allocation13 + $0x18] sm:$0xf]
    %v1642 = vld [vmem:[#allocation13 + $0x1c] sm:$0xf]
    %v1643 = vld [vmem:[#allocation13 + $0x20] sm:$0xf]
    %v1644 = vld [vmem:[#allocation13 + $0x24] sm:$0xf]
    %v1645 = vld [vmem:[#allocation13 + $0x28] sm:$0xf]
    %v1646 = vld [vmem:[#allocation13 + $0x2c] sm:$0xf]
    %v1647 = vld [vmem:[#allocation13 + $0x30] sm:$0xf]
    %v1648 = vld [vmem:[#allocation13 + $0x34] sm:$0xf]
    %v1649 = vld [vmem:[#allocation13 + $0x38] sm:$0xf]
    %v1650 = vld [vmem:[#allocation13 + $0x3c] sm:$0xf]
    %v1651 = vld [vmem:[%s12] sm:$0x1]
    %v1653 = vlaneseq
    %v1654 = vshrl.u32 %v1653, 7
    %v1655 = vsub.s32 0, %v1654
    %v1656 = vrot.slane %v1651, %v1655
    %v1674 = vunpack.c.l.b16 %v1635
    %v1675 = vunpack.c.l.b16 %v1636
    %v1676 = vunpack.c.l.b16 %v1637
    %v1677 = vunpack.c.l.b16 %v1638
    %v1678 = vunpack.c.l.b16 %v1639
    %v1679 = vunpack.c.l.b16 %v1640
    %v1680 = vunpack.c.l.b16 %v1641
    %v1681 = vunpack.c.l.b16 %v1642
    %v1682 = vunpack.c.l.b16 %v1643
    %v1683 = vunpack.c.l.b16 %v1644
    %v1684 = vunpack.c.l.b16 %v1645
    %v1685 = vunpack.c.l.b16 %v1646
    %v1686 = vunpack.c.l.b16 %v1647
    %v1687 = vunpack.c.l.b16 %v1648
    %v1688 = vunpack.c.l.b16 %v1649
    %v1689 = vunpack.c.l.b16 %v1650
    %v1690 = vpack.c.b16 %v1675, %v1674
    %v1691 = vpack.c.b16 %v1677, %v1676
    %v1692 = vpack.c.b16 %v1679, %v1678
    %v1693 = vpack.c.b16 %v1681, %v1680
    %v1694 = vpack.c.b16 %v1683, %v1682
    %v1695 = vpack.c.b16 %v1685, %v1684
    %v1696 = vpack.c.b16 %v1687, %v1686
    %v1697 = vpack.c.b16 %v1689, %v1688
    %1706 = vmatprep.subr.bf16.mxu0 0
    %1707 = vmatpush1.bf16.msra.mxu0 %v1697
    %1708 = vmatprep.subr.bf16.mxu0 0
    %1709 = vmatpush1.bf16.msra.mxu0 %v1696
    %1710 = vmatprep.subr.bf16.mxu0 0
    %1711 = vmatpush1.bf16.msra.mxu0 %v1695
    %1712 = vmatprep.subr.bf16.mxu0 0
    %1713 = vmatpush1.bf16.msra.mxu0 %v1694
    %1714 = vmatprep.subr.bf16.mxu0 0
    %1715 = vmatpush1.bf16.msra.mxu0 %v1693
    %1716 = vmatprep.subr.bf16.mxu0 0
    %1717 = vmatpush1.bf16.msra.mxu0 %v1692
    %1718 = vmatprep.subr.bf16.mxu0 0
    %1719 = vmatpush1.bf16.msra.mxu0 %v1691
    %1720 = vmatprep.subr.bf16.mxu0 0
    %1721 = vmatpush1.bf16.msra.mxu0 %v1690
    %1722 = vmatprep.subr.bf16.mxu0 0
    %1723 = vmatpush2.bf16.msra.mxu0 0
    %1724 = vmatprep.subr.bf16.mxu0 0
    %1725 = vmatpush2.bf16.msra.mxu0 0
    %1726 = vmatprep.subr.bf16.mxu0 0
    %1727 = vmatpush2.bf16.msra.mxu0 0
    %1728 = vmatprep.subr.bf16.mxu0 0
    %1729 = vmatpush2.bf16.msra.mxu0 0
    %1730 = vmatprep.subr.bf16.mxu0 0
    %1731 = vmatpush2.bf16.msra.mxu0 0
    %1732 = vmatprep.subr.bf16.mxu0 0
    %1733 = vmatpush2.bf16.msra.mxu0 0
    %1734 = vmatprep.subr.bf16.mxu0 0
    %1735 = vmatpush2.bf16.msra.mxu0 0
    %1736 = vmatprep.subr.bf16.mxu0 0
    %1737 = vmatpush2.bf16.msra.mxu0 0
    %1738 = vmatprep.mubr.bf16.mxu0 0
    %1739 = vmatmul.mubr.bf16.gmra.mxu0 %v1634
    %v1740 = vpop.f32.mrf.mxu0
    %v1741 = vadd.f32 %v1656, %v1740
    %v1742 = vpop.f32.mrf.mxu0
    %v1743 = vpop.f32.mrf.mxu0
    %v1744 = vpop.f32.mrf.mxu0
    %1745 = vdwg.mxu0
    %1746 = vst [vmem:[#allocation14] sm:$0xff] %v1741
    // Predicated region
    $region82: #{tpu_custom_call.1} parent=1 // pred_check
      _
    $region83: #{tpu_custom_call.1} parent=1 // pred_check_branch
      %1748 = sbr.rel (0) target = $region85
    $region84: #{tpu_custom_call.1} parent=1 // pred_region
      %s1750 = ssub.s32 128, 128
      %1751 = vsyncadd [#allocation4], %s1750
      %s1753 = sshll.u32 [#allocation14], 4
      %s1754 = int_to_ptr.vmem [resolvable:$true] %s1753
      %1756 = dma.vmem_to_hbm [thread:$0]  %s1754, 128, %s13, [#allocation4]
    $region85: #{tpu_custom_call.1} parent=1 // pred_fallthru
      _
    // Predicated region
    $region86: #{tpu_custom_call.1} parent=1 // pred_check
      _
    $region87: #{tpu_custom_call.1} parent=1 // pred_check_branch
      %1758 = sbr.rel (0) target = $region89
    $region88: #{tpu_custom_call.1} parent=1 // pred_region
      %1759 = dma.done [#allocation4], 128
    $region89: #{tpu_custom_call.1} parent=1 // pred_fallthru
      _
    %1760 = vsyncpa [#allocation3], 1
    %1761 = vsyncpa [#allocation6], 1
    %1762 = vsyncpa [#allocation9], 1
    %1763 = vsyncpa [#allocation12], 1
    %1764 = vsyncpa [#allocation4], 1

</llo_original>
